<compile_context>
chip_gen: v6e
topology: v6e:2x2x1
jax: 0.10.0
libtpu: 0.0.40
codegen_flags: <defaults>
</compile_context>

<pallas_src>
import jax
import jax.numpy as jnp
from jax.experimental import pallas as pl
from jax.experimental.pallas import tpu as pltpu


# ----------------------------------------------------------------------------
# Encoder kernel: one grid step per source timestep.
# gates_x = src_emb @ W_ih + b is precomputed in the wrapper; only the
# recurrent h @ W_hh dot and the gate math run here.  h/c are carried in the
# (constant-index) output blocks, which stay VMEM-resident across the grid.
# ----------------------------------------------------------------------------
def _encoder_step_kernel(gx_ref, whh_ref, h_ref, c_ref):
    t = pl.program_id(0)
    H = h_ref.shape[-1]

    @pl.when(t == 0)
    def _():
        h_ref[...] = jnp.zeros_like(h_ref)
        c_ref[...] = jnp.zeros_like(c_ref)

    h = h_ref[...]
    c = c_ref[...]
    gates = gx_ref[0] + jnp.dot(h.astype(jnp.bfloat16), whh_ref[...],
                                preferred_element_type=jnp.float32)
    # Gate order (i, f, o | g): one contiguous sigmoid block, one tanh block.
    sig = jax.nn.sigmoid(gates[:, :3 * H])
    g = jnp.tanh(gates[:, 3 * H:])
    i = sig[:, 0 * H:1 * H]
    f = sig[:, 1 * H:2 * H]
    o = sig[:, 2 * H:3 * H]
    c_new = f * c + i * g
    h_ref[...] = o * jnp.tanh(c_new)
    c_ref[...] = c_new


def encoder_forward(enc_gates_x, w_hh_bf16):
    S, B, G = enc_gates_x.shape
    H = w_hh_bf16.shape[0]
    return pl.pallas_call(
        _encoder_step_kernel,
        out_shape=(jax.ShapeDtypeStruct((B, H), jnp.float32),
                   jax.ShapeDtypeStruct((B, H), jnp.float32)),
        grid=(S,),
        in_specs=[pl.BlockSpec((1, B, G), lambda t: (t, 0, 0)),
                  pl.BlockSpec((H, G), lambda t: (0, 0))],
        out_specs=(pl.BlockSpec((B, H), lambda t: (0, 0)),
                   pl.BlockSpec((B, H), lambda t: (0, 0))),
        compiler_params=pltpu.CompilerParams(
            dimension_semantics=("arbitrary",)),
    )(enc_gates_x, w_hh_bf16)


# ----------------------------------------------------------------------------
# Decoder kernel: one grid step per target timestep.
#   carried scratch:  h, c (B,H) f32 and the gate-space input gx (B,4H) f32.
#   teacher-forced next input  -> precomputed tgt_emb @ W_ih block (current t)
#   greedy next input          -> argmax + one-hot @ (dec_emb @ W_ih)
# Step 0 only initialises state and writes the all-zero outputs[0] block.
# ----------------------------------------------------------------------------
def _decoder_step_kernel(tf_ref,            # (T,) int32 scalar-prefetch (SMEM)
                         tgx_ref,           # (1,B,4H) f32  tgt_emb[t] @ W_ih
                         h0_ref, c0_ref,    # (B,H) f32 encoder final state
                         whh_ref,           # (H,4H) bf16
                         b_ref,             # (1,4H) f32
                         embp_ref,          # (V,4H) bf16  dec_emb @ W_ih
                         wfc_ref,           # (H,V) bf16
                         bfc_ref,           # (1,V) f32
                         out_ref,           # (1,B,V) f32
                         h_s, c_s, gx_s):   # VMEM scratch carries
    t = pl.program_id(0)
    _, B, V = out_ref.shape
    H = h0_ref.shape[-1]

    @pl.when(t == 0)
    def _():
        h_s[...] = h0_ref[...]
        c_s[...] = c0_ref[...]
        gx_s[...] = tgx_ref[0]                      # <sos> row in gate space
        out_ref[...] = jnp.zeros_like(out_ref)      # outputs[0] stays zero

    @pl.when(t > 0)
    def _():
        h = h_s[...]
        c = c_s[...]
        gates = gx_s[...] + b_ref[...] + jnp.dot(
            h.astype(jnp.bfloat16), whh_ref[...],
            preferred_element_type=jnp.float32)
        sig = jax.nn.sigmoid(gates[:, :3 * H])
        g = jnp.tanh(gates[:, 3 * H:])
        i = sig[:, 0 * H:1 * H]
        f = sig[:, 1 * H:2 * H]
        o = sig[:, 2 * H:3 * H]
        c_new = f * c + i * g
        h_new = o * jnp.tanh(c_new)
        h_s[...] = h_new
        c_s[...] = c_new

        logits = jnp.dot(h_new.astype(jnp.bfloat16), wfc_ref[...],
                         preferred_element_type=jnp.float32) + bfc_ref[...]
        out_ref[...] = logits[None, :, :]

        use_tf = tf_ref[t] != 0

        @pl.when(use_tf)
        def _():
            # Teacher forcing: next input is target[t]; skip gather & argmax.
            gx_s[...] = tgx_ref[0]

        @pl.when(jnp.logical_not(use_tf))
        def _():
            # Greedy: argmax (lowest-index tie-break) then one-hot gather
            # straight into gate space on the MXU.
            lane = jax.lax.broadcasted_iota(jnp.int32, (B, V), 1)
            max_val = jnp.max(logits, axis=1, keepdims=True)
            best = jnp.min(jnp.where(logits == max_val, lane, V),
                           axis=1, keepdims=True)                   # (B, 1)
            onehot = (lane == best).astype(jnp.bfloat16)             # (B, V)
            gx_s[...] = jnp.dot(onehot, embp_ref[...],
                                preferred_element_type=jnp.float32)


def decoder_forward(tf_flags, tgt_gates_x, h0, c0, w_hh_bf16, b,
                    emb_proj_bf16, w_fc_bf16, b_fc):
    T, B, G = tgt_gates_x.shape
    H = w_hh_bf16.shape[0]
    V = w_fc_bf16.shape[1]
    grid_spec = pltpu.PrefetchScalarGridSpec(
        num_scalar_prefetch=1,
        grid=(T,),
        in_specs=[
            pl.BlockSpec((1, B, G), lambda t, tf: (t, 0, 0)),  # tgt gates_x[t]
            pl.BlockSpec((B, H), lambda t, tf: (0, 0)),        # h0
            pl.BlockSpec((B, H), lambda t, tf: (0, 0)),        # c0
            pl.BlockSpec((H, G), lambda t, tf: (0, 0)),        # W_hh
            pl.BlockSpec((1, G), lambda t, tf: (0, 0)),        # b
            pl.BlockSpec((V, G), lambda t, tf: (0, 0)),        # dec_emb @ W_ih
            pl.BlockSpec((H, V), lambda t, tf: (0, 0)),        # W_fc
            pl.BlockSpec((1, V), lambda t, tf: (0, 0)),        # b_fc
        ],
        out_specs=pl.BlockSpec((1, B, V), lambda t, tf: (t, 0, 0)),
        scratch_shapes=[pltpu.VMEM((B, H), jnp.float32),
                        pltpu.VMEM((B, H), jnp.float32),
                        pltpu.VMEM((B, G), jnp.float32)],
    )
    return pl.pallas_call(
        _decoder_step_kernel,
        out_shape=jax.ShapeDtypeStruct((T, B, V), jnp.float32),
        grid_spec=grid_spec,
        compiler_params=pltpu.CompilerParams(
            dimension_semantics=("arbitrary",)),
    )(tf_flags, tgt_gates_x, h0, c0, w_hh_bf16, b, emb_proj_bf16,
      w_fc_bf16, b_fc)


# ----------------------------------------------------------------------------
# Gate-column reorder: PyTorch (i, f, g, o) -> kernel-friendly (i, f, o, g)
# ----------------------------------------------------------------------------
def _reorder_gates(w_ih, w_hh, b, H):
    def ro(m):
        return jnp.concatenate(
            [m[:, :2 * H], m[:, 3 * H:], m[:, 2 * H:3 * H]], axis=1)
    return ro(w_ih), ro(w_hh), ro(b)


# ----------------------------------------------------------------------------
# Seq2Seq forward (mirrors the PyTorch module's forward)
# ----------------------------------------------------------------------------
def seq2seq_forward(params, source, target, key, teacher_force_ratio=0.5):
    """source: (src_len, B) int32, target: (tgt_len, B) int32.
    Returns outputs: (tgt_len, B, tgt_vocab) float32, outputs[0] == 0."""
    tgt_len, B = target.shape
    H = params["enc_whh"].shape[0]
    bf16 = jnp.bfloat16

    enc_wih, enc_whh, enc_b = _reorder_gates(
        params["enc_wih"], params["enc_whh"], params["enc_b"], H)
    dec_wih, dec_whh, dec_b = _reorder_gates(
        params["dec_wih"], params["dec_whh"], params["dec_b"], H)

    # ----- encoder: one big hoisted input projection + fused recurrence -----
    src_emb = jnp.take(params["enc_emb"], source, axis=0)        # (S, B, E)
    S, _, E = src_emb.shape
    enc_gates_x = (jnp.dot(src_emb.reshape(S * B, E).astype(bf16),
                           enc_wih.astype(bf16),
                           preferred_element_type=jnp.float32)
                   + enc_b).reshape(S, B, 4 * H)
    h, c = encoder_forward(enc_gates_x, enc_whh.astype(bf16))

    # ----- decoder precomputation (gate-space inputs) -----
    tgt_emb = jnp.take(params["dec_emb"], target, axis=0)        # (T, B, E)
    tgt_gates_x = jnp.dot(tgt_emb.reshape(tgt_len * B, E).astype(bf16),
                          dec_wih.astype(bf16),
                          preferred_element_type=jnp.float32
                          ).reshape(tgt_len, B, 4 * H)
    emb_proj = jnp.dot(params["dec_emb"].astype(bf16), dec_wih.astype(bf16),
                       preferred_element_type=jnp.float32).astype(bf16)

    # Per-timestep teacher-forcing decisions (flag t selects input for t+1).
    tf_draws = jax.random.uniform(key, (tgt_len,))
    tf_flags = (tf_draws < teacher_force_ratio).astype(jnp.int32)

    outputs = decoder_forward(tf_flags, tgt_gates_x, h, c,
                              dec_whh.astype(bf16), dec_b, emb_proj,
                              params["dec_fc_w"].astype(bf16),
                              params["dec_fc_b"])
    return outputs                                               # (T, B, V)


# ----------------------------------------------------------------------------
# Deterministic parameter init (PyTorch gate layout i, f, g, o)
# ----------------------------------------------------------------------------
def init_params(key, src_vocab, tgt_vocab, emb_dim, hidden):
    ks = jax.random.split(key, 10)
    s = 0.1
    return {
        "enc_emb": s * jax.random.normal(ks[0], (src_vocab, emb_dim), jnp.float32),
        "enc_wih": s * jax.random.normal(ks[1], (emb_dim, 4 * hidden), jnp.float32),
        "enc_whh": s * jax.random.normal(ks[2], (hidden, 4 * hidden), jnp.float32),
        "enc_b":   s * jax.random.normal(ks[3], (1, 4 * hidden), jnp.float32),
        "dec_emb": s * jax.random.normal(ks[4], (tgt_vocab, emb_dim), jnp.float32),
        "dec_wih": s * jax.random.normal(ks[5], (emb_dim, 4 * hidden), jnp.float32),
        "dec_whh": s * jax.random.normal(ks[6], (hidden, 4 * hidden), jnp.float32),
        "dec_b":   s * jax.random.normal(ks[7], (1, 4 * hidden), jnp.float32),
        "dec_fc_w": s * jax.random.normal(ks[8], (hidden, tgt_vocab), jnp.float32),
        "dec_fc_b": s * jax.random.normal(ks[9], (1, tgt_vocab), jnp.float32),
    }


if __name__ == "__main__":
    key = jax.random.PRNGKey(0)
    k_param, k_src, k_tgt, k_tf = jax.random.split(key, 4)

    # Small shapes; HIDDEN/EMB = 128 so gate slices are lane-aligned.
    SRC_VOCAB, TGT_VOCAB = 128, 128
    EMB, HIDDEN = 128, 128
    SRC_LEN, TGT_LEN, BATCH = 10, 8, 8

    params = init_params(k_param, SRC_VOCAB, TGT_VOCAB, EMB, HIDDEN)

    source = jax.random.randint(k_src, (SRC_LEN, BATCH), 0, SRC_VOCAB, jnp.int32)
    target = jax.random.randint(k_tgt, (TGT_LEN, BATCH), 0, TGT_VOCAB, jnp.int32)

    fwd = jax.jit(seq2seq_forward)
    outputs = fwd(params, source, target, k_tf, teacher_force_ratio=0.5)
    jax.block_until_ready(outputs)

    assert outputs.shape == (TGT_LEN, BATCH, TGT_VOCAB)
    assert bool(jnp.all(outputs[0] == 0.0))
    assert bool(jnp.all(jnp.isfinite(outputs)))
    print("KERNEL_OK")
</pallas_src>

<mosaic_0001>
module attributes {stable_mosaic.version = 11 : i64} {
  func.func @_encoder_step_kernel(%arg0: i32, %arg1: memref<1x8x512xf32, #tpu.memory_space<vmem>>, %arg2: memref<128x512xbf16, #tpu.memory_space<vmem>>, %arg3: memref<8x128xf32, #tpu.memory_space<vmem>>, %arg4: memref<8x128xf32, #tpu.memory_space<vmem>>) attributes {dimension_semantics = [#tpu.dimension_semantics<arbitrary>], iteration_bounds = array<i64: 10>, scalar_prefetch = 0 : i64, scratch_operands = 0 : i64, tpu.core_type = #tpu.core_type<tc>, window_params = [{transform_indices = @transform_0, window_bounds = array<i64: 1, 8, 512>}, {pipeline_mode = #tpu.pipeline_mode<synchronous>, transform_indices = @transform_1, window_bounds = array<i64: 128, 512>}, {pipeline_mode = #tpu.pipeline_mode<synchronous>, transform_indices = @transform_2, window_bounds = array<i64: 8, 128>}, {pipeline_mode = #tpu.pipeline_mode<synchronous>, transform_indices = @transform_3, window_bounds = array<i64: 8, 128>}]} {
    %c0_i32 = arith.constant 0 : i32
    %0 = arith.cmpi eq, %arg0, %c0_i32 : i32
    %1 = arith.extui %0 : i1 to i32
    %c0_i32_0 = arith.constant 0 : i32
    %2 = arith.cmpi ne, %1, %c0_i32_0 : i32
    scf.if %2 {
      %cst_14 = arith.constant 0.000000e+00 : f32
      %29 = vector.broadcast %cst_14 : f32 to vector<8x128xf32>
      %c0_15 = arith.constant 0 : index
      %c0_16 = arith.constant 0 : index
      %30 = vector.load %arg3[%c0_15, %c0_16] : memref<8x128xf32, #tpu.memory_space<vmem>>, vector<8x128xf32>
      tpu.vector_store %arg3[%c0_15, %c0_16], %29 {strides = array<i32>} : memref<8x128xf32, #tpu.memory_space<vmem>>, vector<8x128xf32>,
      %cst_17 = arith.constant 0.000000e+00 : f32
      %31 = vector.broadcast %cst_17 : f32 to vector<8x128xf32>
      %c0_18 = arith.constant 0 : index
      %c0_19 = arith.constant 0 : index
      %32 = vector.load %arg4[%c0_18, %c0_19] : memref<8x128xf32, #tpu.memory_space<vmem>>, vector<8x128xf32>
      tpu.vector_store %arg4[%c0_18, %c0_19], %31 {strides = array<i32>} : memref<8x128xf32, #tpu.memory_space<vmem>>, vector<8x128xf32>,
    } else {
    }
    %c0 = arith.constant 0 : index
    %c0_1 = arith.constant 0 : index
    %3 = vector.load %arg3[%c0, %c0_1] : memref<8x128xf32, #tpu.memory_space<vmem>>, vector<8x128xf32>
    %c0_2 = arith.constant 0 : index
    %c0_3 = arith.constant 0 : index
    %4 = vector.load %arg4[%c0_2, %c0_3] : memref<8x128xf32, #tpu.memory_space<vmem>>, vector<8x128xf32>
    %c0_4 = arith.constant 0 : index
    %c0_5 = arith.constant 0 : index
    %c0_6 = arith.constant 0 : index
    %5 = vector.load %arg1[%c0_4, %c0_5, %c0_6] : memref<1x8x512xf32, #tpu.memory_space<vmem>>, vector<1x8x512xf32>
    %6 = vector.shape_cast %5 : vector<1x8x512xf32> to vector<8x512xf32>
    %7 = arith.truncf %3 : vector<8x128xf32> to vector<8x128xbf16>
    %c0_7 = arith.constant 0 : index
    %c0_8 = arith.constant 0 : index
    %8 = vector.load %arg2[%c0_7, %c0_8] : memref<128x512xbf16, #tpu.memory_space<vmem>>, vector<128x512xbf16>
    %cst = arith.constant dense<0.000000e+00> : vector<8x512xf32>
    %9 = tpu.matmul %7, %8, %cst {dimension_numbers = #tpu.dot_dimension_numbers<[1], [0], [0], [1], [0, 0, 1, 1], [], []>} : vector<8x128xbf16>, vector<128x512xbf16>, vector<8x512xf32> -> vector<8x512xf32>
    %10 = arith.addf %6, %9 : vector<8x512xf32>
    %11 = vector.extract_strided_slice %10 {offsets = [0, 0], sizes = [8, 384], strides = [1, 1]} : vector<8x512xf32> to vector<8x384xf32>
    %12 = arith.negf %11 : vector<8x384xf32>
    %13 = math.exp %12 : vector<8x384xf32>
    %cst_9 = arith.constant 1.000000e+00 : f32
    %14 = vector.broadcast %cst_9 : f32 to vector<8x384xf32>
    %15 = arith.addf %14, %13 : vector<8x384xf32>
    %16 = arith.divf %14, %15 : vector<8x384xf32>
    %17 = vector.extract_strided_slice %10 {offsets = [0, 384], sizes = [8, 128], strides = [1, 1]} : vector<8x512xf32> to vector<8x128xf32>
    %18 = math.tanh %17 : vector<8x128xf32>
    %19 = vector.extract_strided_slice %16 {offsets = [0, 0], sizes = [8, 128], strides = [1, 1]} : vector<8x384xf32> to vector<8x128xf32>
    %20 = vector.extract_strided_slice %16 {offsets = [0, 128], sizes = [8, 128], strides = [1, 1]} : vector<8x384xf32> to vector<8x128xf32>
    %21 = vector.extract_strided_slice %16 {offsets = [0, 256], sizes = [8, 128], strides = [1, 1]} : vector<8x384xf32> to vector<8x128xf32>
    %22 = arith.mulf %20, %4 : vector<8x128xf32>
    %23 = arith.mulf %19, %18 : vector<8x128xf32>
    %24 = arith.addf %22, %23 : vector<8x128xf32>
    %25 = math.tanh %24 : vector<8x128xf32>
    %26 = arith.mulf %21, %25 : vector<8x128xf32>
    %c0_10 = arith.constant 0 : index
    %c0_11 = arith.constant 0 : index
    %27 = vector.load %arg3[%c0_10, %c0_11] : memref<8x128xf32, #tpu.memory_space<vmem>>, vector<8x128xf32>
    tpu.vector_store %arg3[%c0_10, %c0_11], %26 {strides = array<i32>} : memref<8x128xf32, #tpu.memory_space<vmem>>, vector<8x128xf32>,
    %c0_12 = arith.constant 0 : index
    %c0_13 = arith.constant 0 : index
    %28 = vector.load %arg4[%c0_12, %c0_13] : memref<8x128xf32, #tpu.memory_space<vmem>>, vector<8x128xf32>
    tpu.vector_store %arg4[%c0_12, %c0_13], %24 {strides = array<i32>} : memref<8x128xf32, #tpu.memory_space<vmem>>, vector<8x128xf32>,
    return
  }
  func.func @transform_0(%arg0: i32) -> (i32, i32, i32) {
    %c0_i32 = arith.constant 0 : i32
    %c0_i32_0 = arith.constant 0 : i32
    %c0_i32_1 = arith.constant 0 : i32
    return %arg0, %c0_i32, %c0_i32_0 : i32, i32, i32
  }
  func.func @transform_1(%arg0: i32) -> (i32, i32) {
    %c0_i32 = arith.constant 0 : i32
    %c0_i32_0 = arith.constant 0 : i32
    %c0_i32_1 = arith.constant 0 : i32
    return %c0_i32, %c0_i32_0 : i32, i32
  }
  func.func @transform_2(%arg0: i32) -> (i32, i32) {
    %c0_i32 = arith.constant 0 : i32
    %c0_i32_0 = arith.constant 0 : i32
    %c0_i32_1 = arith.constant 0 : i32
    return %c0_i32, %c0_i32_0 : i32, i32
  }
  func.func @transform_3(%arg0: i32) -> (i32, i32) {
    %c0_i32 = arith.constant 0 : i32
    %c0_i32_0 = arith.constant 0 : i32
    %c0_i32_1 = arith.constant 0 : i32
    return %c0_i32, %c0_i32_0 : i32, i32
  }
}

module attributes {stable_mosaic.version = 11 : i64} {
  func.func @_decoder_step_kernel(%arg0: i32, %arg1: memref<8xi32, #tpu.memory_space<smem>>, %arg2: memref<1x8x512xf32, #tpu.memory_space<vmem>>, %arg3: memref<8x128xf32, #tpu.memory_space<vmem>>, %arg4: memref<8x128xf32, #tpu.memory_space<vmem>>, %arg5: memref<128x512xbf16, #tpu.memory_space<vmem>>, %arg6: memref<1x512xf32, #tpu.memory_space<vmem>>, %arg7: memref<128x512xbf16, #tpu.memory_space<vmem>>, %arg8: memref<128x128xbf16, #tpu.memory_space<vmem>>, %arg9: memref<1x128xf32, #tpu.memory_space<vmem>>, %arg10: memref<1x8x128xf32, #tpu.memory_space<vmem>>, %arg11: memref<8x128xf32, #tpu.memory_space<vmem>>, %arg12: memref<8x128xf32, #tpu.memory_space<vmem>>, %arg13: memref<8x512xf32, #tpu.memory_space<vmem>>) attributes {dimension_semantics = [#tpu.dimension_semantics<arbitrary>], iteration_bounds = array<i64: 8>, scalar_prefetch = 1 : i64, scratch_operands = 3 : i64, tpu.core_type = #tpu.core_type<tc>, window_params = [{transform_indices = @transform_0, window_bounds = array<i64: 1, 8, 512>}, {pipeline_mode = #tpu.pipeline_mode<synchronous>, transform_indices = @transform_1, window_bounds = array<i64: 8, 128>}, {pipeline_mode = #tpu.pipeline_mode<synchronous>, transform_indices = @transform_2, window_bounds = array<i64: 8, 128>}, {pipeline_mode = #tpu.pipeline_mode<synchronous>, transform_indices = @transform_3, window_bounds = array<i64: 128, 512>}, {pipeline_mode = #tpu.pipeline_mode<synchronous>, transform_indices = @transform_4, window_bounds = array<i64: 1, 512>}, {pipeline_mode = #tpu.pipeline_mode<synchronous>, transform_indices = @transform_5, window_bounds = array<i64: 128, 512>}, {pipeline_mode = #tpu.pipeline_mode<synchronous>, transform_indices = @transform_6, window_bounds = array<i64: 128, 128>}, {pipeline_mode = #tpu.pipeline_mode<synchronous>, transform_indices = @transform_7, window_bounds = array<i64: 1, 128>}, {transform_indices = @transform_8, window_bounds = array<i64: 1, 8, 128>}]} {
    %c0_i32 = arith.constant 0 : i32
    %0 = arith.cmpi eq, %arg0, %c0_i32 : i32
    %1 = arith.extui %0 : i1 to i32
    %c0_i32_0 = arith.constant 0 : i32
    %2 = arith.cmpi ne, %1, %c0_i32_0 : i32
    scf.if %2 {
      %c0 = arith.constant 0 : index
      %c0_3 = arith.constant 0 : index
      %6 = vector.load %arg3[%c0, %c0_3] : memref<8x128xf32, #tpu.memory_space<vmem>>, vector<8x128xf32>
      %c0_4 = arith.constant 0 : index
      %c0_5 = arith.constant 0 : index
      %7 = vector.load %arg11[%c0_4, %c0_5] : memref<8x128xf32, #tpu.memory_space<vmem>>, vector<8x128xf32>
      tpu.vector_store %arg11[%c0_4, %c0_5], %6 {strides = array<i32>} : memref<8x128xf32, #tpu.memory_space<vmem>>, vector<8x128xf32>,
      %c0_6 = arith.constant 0 : index
      %c0_7 = arith.constant 0 : index
      %8 = vector.load %arg4[%c0_6, %c0_7] : memref<8x128xf32, #tpu.memory_space<vmem>>, vector<8x128xf32>
      %c0_8 = arith.constant 0 : index
      %c0_9 = arith.constant 0 : index
      %9 = vector.load %arg12[%c0_8, %c0_9] : memref<8x128xf32, #tpu.memory_space<vmem>>, vector<8x128xf32>
      tpu.vector_store %arg12[%c0_8, %c0_9], %8 {strides = array<i32>} : memref<8x128xf32, #tpu.memory_space<vmem>>, vector<8x128xf32>,
      %c0_10 = arith.constant 0 : index
      %c0_11 = arith.constant 0 : index
      %c0_12 = arith.constant 0 : index
      %10 = vector.load %arg2[%c0_10, %c0_11, %c0_12] : memref<1x8x512xf32, #tpu.memory_space<vmem>>, vector<1x8x512xf32>
      %11 = vector.shape_cast %10 : vector<1x8x512xf32> to vector<8x512xf32>
      %c0_13 = arith.constant 0 : index
      %c0_14 = arith.constant 0 : index
      %12 = vector.load %arg13[%c0_13, %c0_14] : memref<8x512xf32, #tpu.memory_space<vmem>>, vector<8x512xf32>
      tpu.vector_store %arg13[%c0_13, %c0_14], %11 {strides = array<i32>} : memref<8x512xf32, #tpu.memory_space<vmem>>, vector<8x512xf32>,
      %cst = arith.constant 0.000000e+00 : f32
      %13 = vector.broadcast %cst : f32 to vector<1x8x128xf32>
      %c0_15 = arith.constant 0 : index
      %c0_16 = arith.constant 0 : index
      %c0_17 = arith.constant 0 : index
      %14 = vector.load %arg10[%c0_15, %c0_16, %c0_17] : memref<1x8x128xf32, #tpu.memory_space<vmem>>, vector<1x8x128xf32>
      tpu.vector_store %arg10[%c0_15, %c0_16, %c0_17], %13 {strides = array<i32>} : memref<1x8x128xf32, #tpu.memory_space<vmem>>, vector<1x8x128xf32>,
    } else {
    }
    %c0_i32_1 = arith.constant 0 : i32
    %3 = arith.cmpi sgt, %arg0, %c0_i32_1 : i32
    %4 = arith.extui %3 : i1 to i32
    %c0_i32_2 = arith.constant 0 : i32
    %5 = arith.cmpi ne, %4, %c0_i32_2 : i32
    scf.if %5 {
      %c0 = arith.constant 0 : index
      %c0_3 = arith.constant 0 : index
      %6 = vector.load %arg11[%c0, %c0_3] : memref<8x128xf32, #tpu.memory_space<vmem>>, vector<8x128xf32>
      %c0_4 = arith.constant 0 : index
      %c0_5 = arith.constant 0 : index
      %7 = vector.load %arg12[%c0_4, %c0_5] : memref<8x128xf32, #tpu.memory_space<vmem>>, vector<8x128xf32>
      %c0_6 = arith.constant 0 : index
      %c0_7 = arith.constant 0 : index
      %8 = vector.load %arg13[%c0_6, %c0_7] : memref<8x512xf32, #tpu.memory_space<vmem>>, vector<8x512xf32>
      %c0_8 = arith.constant 0 : index
      %c0_9 = arith.constant 0 : index
      %9 = vector.load %arg6[%c0_8, %c0_9] : memref<1x512xf32, #tpu.memory_space<vmem>>, vector<1x512xf32>
      %10 = vector.broadcast %9 : vector<1x512xf32> to vector<8x512xf32>
      %11 = arith.addf %8, %10 : vector<8x512xf32>
      %12 = arith.truncf %6 : vector<8x128xf32> to vector<8x128xbf16>
      %c0_10 = arith.constant 0 : index
      %c0_11 = arith.constant 0 : index
      %13 = vector.load %arg5[%c0_10, %c0_11] : memref<128x512xbf16, #tpu.memory_space<vmem>>, vector<128x512xbf16>
      %cst = arith.constant dense<0.000000e+00> : vector<8x512xf32>
      %14 = tpu.matmul %12, %13, %cst {dimension_numbers = #tpu.dot_dimension_numbers<[1], [0], [0], [1], [0, 0, 1, 1], [], []>} : vector<8x128xbf16>, vector<128x512xbf16>, vector<8x512xf32> -> vector<8x512xf32>
      %15 = arith.addf %11, %14 : vector<8x512xf32>
      %16 = vector.extract_strided_slice %15 {offsets = [0, 0], sizes = [8, 384], strides = [1, 1]} : vector<8x512xf32> to vector<8x384xf32>
      %17 = arith.negf %16 : vector<8x384xf32>
      %18 = math.exp %17 : vector<8x384xf32>
      %cst_12 = arith.constant 1.000000e+00 : f32
      %19 = vector.broadcast %cst_12 : f32 to vector<8x384xf32>
      %20 = arith.addf %19, %18 : vector<8x384xf32>
      %21 = arith.divf %19, %20 : vector<8x384xf32>
      %22 = vector.extract_strided_slice %15 {offsets = [0, 384], sizes = [8, 128], strides = [1, 1]} : vector<8x512xf32> to vector<8x128xf32>
      %23 = math.tanh %22 : vector<8x128xf32>
      %24 = vector.extract_strided_slice %21 {offsets = [0, 0], sizes = [8, 128], strides = [1, 1]} : vector<8x384xf32> to vector<8x128xf32>
      %25 = vector.extract_strided_slice %21 {offsets = [0, 128], sizes = [8, 128], strides = [1, 1]} : vector<8x384xf32> to vector<8x128xf32>
      %26 = vector.extract_strided_slice %21 {offsets = [0, 256], sizes = [8, 128], strides = [1, 1]} : vector<8x384xf32> to vector<8x128xf32>
      %27 = arith.mulf %25, %7 : vector<8x128xf32>
      %28 = arith.mulf %24, %23 : vector<8x128xf32>
      %29 = arith.addf %27, %28 : vector<8x128xf32>
      %30 = math.tanh %29 : vector<8x128xf32>
      %31 = arith.mulf %26, %30 : vector<8x128xf32>
      %c0_13 = arith.constant 0 : index
      %c0_14 = arith.constant 0 : index
      %32 = vector.load %arg11[%c0_13, %c0_14] : memref<8x128xf32, #tpu.memory_space<vmem>>, vector<8x128xf32>
      tpu.vector_store %arg11[%c0_13, %c0_14], %31 {strides = array<i32>} : memref<8x128xf32, #tpu.memory_space<vmem>>, vector<8x128xf32>,
      %c0_15 = arith.constant 0 : index
      %c0_16 = arith.constant 0 : index
      %33 = vector.load %arg12[%c0_15, %c0_16] : memref<8x128xf32, #tpu.memory_space<vmem>>, vector<8x128xf32>
      tpu.vector_store %arg12[%c0_15, %c0_16], %29 {strides = array<i32>} : memref<8x128xf32, #tpu.memory_space<vmem>>, vector<8x128xf32>,
      %34 = arith.truncf %31 : vector<8x128xf32> to vector<8x128xbf16>
      %c0_17 = arith.constant 0 : index
      %c0_18 = arith.constant 0 : index
      %35 = vector.load %arg8[%c0_17, %c0_18] : memref<128x128xbf16, #tpu.memory_space<vmem>>, vector<128x128xbf16>
      %cst_19 = arith.constant dense<0.000000e+00> : vector<8x128xf32>
      %36 = tpu.matmul %34, %35, %cst_19 {dimension_numbers = #tpu.dot_dimension_numbers<[1], [0], [0], [1], [0, 0, 1, 1], [], []>} : vector<8x128xbf16>, vector<128x128xbf16>, vector<8x128xf32> -> vector<8x128xf32>
      %c0_20 = arith.constant 0 : index
      %c0_21 = arith.constant 0 : index
      %37 = vector.load %arg9[%c0_20, %c0_21] : memref<1x128xf32, #tpu.memory_space<vmem>>, vector<1x128xf32>
      %38 = vector.broadcast %37 : vector<1x128xf32> to vector<8x128xf32>
      %39 = arith.addf %36, %38 : vector<8x128xf32>
      %40 = vector.shape_cast %39 : vector<8x128xf32> to vector<1x8x128xf32>
      %c0_22 = arith.constant 0 : index
      %c0_23 = arith.constant 0 : index
      %c0_24 = arith.constant 0 : index
      %41 = vector.load %arg10[%c0_22, %c0_23, %c0_24] : memref<1x8x128xf32, #tpu.memory_space<vmem>>, vector<1x8x128xf32>
      tpu.vector_store %arg10[%c0_22, %c0_23, %c0_24], %40 {strides = array<i32>} : memref<1x8x128xf32, #tpu.memory_space<vmem>>, vector<1x8x128xf32>,
      %42 = arith.index_cast %arg0 : i32 to index
      %43 = memref.load %arg1[%42] : memref<8xi32, #tpu.memory_space<smem>>
      %c0_i32_25 = arith.constant 0 : i32
      %44 = arith.cmpi ne, %43, %c0_i32_25 : i32
      %45 = arith.extui %44 : i1 to i32
      %c0_i32_26 = arith.constant 0 : i32
      %46 = arith.cmpi ne, %45, %c0_i32_26 : i32
      scf.if %46 {
        %c0_28 = arith.constant 0 : index
        %c0_29 = arith.constant 0 : index
        %c0_30 = arith.constant 0 : index
        %50 = vector.load %arg2[%c0_28, %c0_29, %c0_30] : memref<1x8x512xf32, #tpu.memory_space<vmem>>, vector<1x8x512xf32>
        %51 = vector.shape_cast %50 : vector<1x8x512xf32> to vector<8x512xf32>
        %c0_31 = arith.constant 0 : index
        %c0_32 = arith.constant 0 : index
        %52 = vector.load %arg13[%c0_31, %c0_32] : memref<8x512xf32, #tpu.memory_space<vmem>>, vector<8x512xf32>
        tpu.vector_store %arg13[%c0_31, %c0_32], %51 {strides = array<i32>} : memref<8x512xf32, #tpu.memory_space<vmem>>, vector<8x512xf32>,
      } else {
      }
      %true = arith.constant true
      %47 = arith.xori %44, %true : i1
      %48 = arith.extui %47 : i1 to i32
      %c0_i32_27 = arith.constant 0 : i32
      %49 = arith.cmpi ne, %48, %c0_i32_27 : i32
      scf.if %49 {
        %50 = tpu.iota {dimensions = array<i32: 1>} : vector<8x128xi32>
        %cst_28 = arith.constant dense<0xFF800000> : vector<8xf32>
        %51 = vector.multi_reduction <maximumf>, %39, %cst_28 [1] : vector<8x128xf32> to vector<8xf32>
        %52 = vector.shape_cast %51 : vector<8xf32> to vector<8x1xf32>
        %53 = vector.broadcast %52 : vector<8x1xf32> to vector<8x128xf32>
        %54 = arith.cmpf oeq, %39, %53 : vector<8x128xf32>
        %c128_i32 = arith.constant 128 : i32
        %55 = vector.broadcast %c128_i32 : i32 to vector<8x128xi32>
        %56 = arith.select %54, %50, %55 : vector<8x128xi1>, vector<8x128xi32>
        %cst_29 = arith.constant dense<2147483647> : vector<8xi32>
        %57 = vector.multi_reduction <minsi>, %56, %cst_29 [1] : vector<8x128xi32> to vector<8xi32>
        %58 = vector.shape_cast %57 : vector<8xi32> to vector<8x1xi32>
        %59 = vector.broadcast %58 : vector<8x1xi32> to vector<8x128xi32>
        %60 = arith.cmpi eq, %50, %59 : vector<8x128xi32>
        %61 = arith.extui %60 : vector<8x128xi1> to vector<8x128xi32>
        %62 = arith.sitofp %61 : vector<8x128xi32> to vector<8x128xf32>
        %63 = arith.truncf %62 : vector<8x128xf32> to vector<8x128xbf16>
        %c0_30 = arith.constant 0 : index
        %c0_31 = arith.constant 0 : index
        %64 = vector.load %arg7[%c0_30, %c0_31] : memref<128x512xbf16, #tpu.memory_space<vmem>>, vector<128x512xbf16>
        %cst_32 = arith.constant dense<0.000000e+00> : vector<8x512xf32>
        %65 = tpu.matmul %63, %64, %cst_32 {dimension_numbers = #tpu.dot_dimension_numbers<[1], [0], [0], [1], [0, 0, 1, 1], [], []>} : vector<8x128xbf16>, vector<128x512xbf16>, vector<8x512xf32> -> vector<8x512xf32>
        %c0_33 = arith.constant 0 : index
        %c0_34 = arith.constant 0 : index
        %66 = vector.load %arg13[%c0_33, %c0_34] : memref<8x512xf32, #tpu.memory_space<vmem>>, vector<8x512xf32>
        tpu.vector_store %arg13[%c0_33, %c0_34], %65 {strides = array<i32>} : memref<8x512xf32, #tpu.memory_space<vmem>>, vector<8x512xf32>,
      } else {
      }
    } else {
    }
    return
  }
  func.func @transform_0(%arg0: i32, %arg1: memref<8xi32, #tpu.memory_space<smem>>) -> (i32, i32, i32) {
    %c0_i32 = arith.constant 0 : i32
    %c0_i32_0 = arith.constant 0 : i32
    %c0_i32_1 = arith.constant 0 : i32
    return %arg0, %c0_i32, %c0_i32_0 : i32, i32, i32
  }
  func.func @transform_1(%arg0: i32, %arg1: memref<8xi32, #tpu.memory_space<smem>>) -> (i32, i32) {
    %c0_i32 = arith.constant 0 : i32
    %c0_i32_0 = arith.constant 0 : i32
    %c0_i32_1 = arith.constant 0 : i32
    return %c0_i32, %c0_i32_0 : i32, i32
  }
  func.func @transform_2(%arg0: i32, %arg1: memref<8xi32, #tpu.memory_space<smem>>) -> (i32, i32) {
    %c0_i32 = arith.constant 0 : i32
    %c0_i32_0 = arith.constant 0 : i32
    %c0_i32_1 = arith.constant 0 : i32
    return %c0_i32, %c0_i32_0 : i32, i32
  }
  func.func @transform_3(%arg0: i32, %arg1: memref<8xi32, #tpu.memory_space<smem>>) -> (i32, i32) {
    %c0_i32 = arith.constant 0 : i32
    %c0_i32_0 = arith.constant 0 : i32
    %c0_i32_1 = arith.constant 0 : i32
    return %c0_i32, %c0_i32_0 : i32, i32
  }
  func.func @transform_4(%arg0: i32, %arg1: memref<8xi32, #tpu.memory_space<smem>>) -> (i32, i32) {
    %c0_i32 = arith.constant 0 : i32
    %c0_i32_0 = arith.constant 0 : i32
    %c0_i32_1 = arith.constant 0 : i32
    return %c0_i32, %c0_i32_0 : i32, i32
  }
  func.func @transform_5(%arg0: i32, %arg1: memref<8xi32, #tpu.memory_space<smem>>) -> (i32, i32) {
    %c0_i32 = arith.constant 0 : i32
    %c0_i32_0 = arith.constant 0 : i32
    %c0_i32_1 = arith.constant 0 : i32
    return %c0_i32, %c0_i32_0 : i32, i32
  }
  func.func @transform_6(%arg0: i32, %arg1: memref<8xi32, #tpu.memory_space<smem>>) -> (i32, i32) {
    %c0_i32 = arith.constant 0 : i32
    %c0_i32_0 = arith.constant 0 : i32
    %c0_i32_1 = arith.constant 0 : i32
    return %c0_i32, %c0_i32_0 : i32, i32
  }
  func.func @transform_7(%arg0: i32, %arg1: memref<8xi32, #tpu.memory_space<smem>>) -> (i32, i32) {
    %c0_i32 = arith.constant 0 : i32
    %c0_i32_0 = arith.constant 0 : i32
    %c0_i32_1 = arith.constant 0 : i32
    return %c0_i32, %c0_i32_0 : i32, i32
  }
  func.func @transform_8(%arg0: i32, %arg1: memref<8xi32, #tpu.memory_space<smem>>) -> (i32, i32, i32) {
    %c0_i32 = arith.constant 0 : i32
    %c0_i32_0 = arith.constant 0 : i32
    %c0_i32_1 = arith.constant 0 : i32
    return %arg0, %c0_i32, %c0_i32_0 : i32, i32, i32
  }
}

</mosaic_0001>

<llo_original>
// kernel: seq2seq_forward.2
$region0: #{seq2seq_forward.2}
  #allocation0 [shape = 'u32[]', space=smem, size = 0x4, offset = 0x4, fixed_abs, tag = 'smem constant byte address 0x4 - core index']
  #allocation1 [shape = 'u32[144,128]{1,0:T(1,128)}', space=vmem, size = 0x12000, scoped, tag = 'internal scratch']
  %s0 = inlined_call_operand.vmem [shape: f32[10,8,512], index: 0, kind: input, shape index: {}]
  %s1 = inlined_call_operand.vmem [shape: bf16[128,512], index: 1, kind: input, shape index: {}]
  %s2 = inlined_call_operand.vmem [shape: f32[8,128], index: 2, kind: output, shape index: {0}]
  %s3 = inlined_call_operand.vmem [shape: f32[8,128], index: 3, kind: output, shape index: {1}]
  %4 = xla_tuple %s2, %s3
  %s5 = sld [smem:[#allocation0]]
  $region53: #{seq2seq_forward.2} parent=0
    _
  %s7 = ssub.s32 1, %s5
  %s8 = scalar_select 0, %s7, %s5
  loop: start=0, step=1, limit=12
  $region2: #{seq2seq_forward.2} parent=0 // loop_pre_header
    _
  $region3: #{seq2seq_forward.2} parent=0 // loop_header
    %s10 = sphi 0, %s14
    %p11 = scmp.ge.s32.totalorder %s10, 12
    %s20 = sphi 0, %s22
    %s23 = sphi 0, %s20
    %s24 = sphi 0, %s23
    %s40 = sphi 0, %s24
    %s44 = sphi 0, %s44
    %s46 = sphi 0, %s44
    %s47 = sphi 0, %s46
    %s61 = sphi 0, %s47
    %s65 = sphi 0, %s65
    %s67 = sphi 0, %s65
    %s68 = sphi 0, %s67
    %s82 = sphi 0, %s68
    %s86 = sphi 0, %s86
    %s88 = sphi 0, %s86
    %s89 = sphi 0, %s88
    %s103 = sphi 0, %s89
  $region4: #{seq2seq_forward.2} parent=0 // loop_header_branch
    %13 = sbr.rel (%p11) target = $region8
  $region5: #{seq2seq_forward.2} parent=0 // loop_body
    %s15 = ssub.s32 %s10, 1
    %s16 = ssub.s32 %s10, 2
    %s17 = sadd.s32 %s10, 1
    %s18 = ssub.s32 %s10, %s17
    %p19 = scmp.eq.s32.totalorder %s18, 0
    %s21 = sadd.s32 %s20, 1
    %s22 = scalar_select %p19, %s20, %s21
    %p25 = pneg %p19
    %p26 = scmp.eq.s32.totalorder %s10, 9
    %p27 = por %p25, %p26
    %p28 = scmp.ne.s32.totalorder %s20, %s23
    %p29 = scmp.eq.s32.totalorder %s10, 0
    %p30 = por %p28, %p29
    %p31 = scmp.ne.s32.totalorder %s20, %s23
    %p32 = scmp.eq.s32.totalorder %s15, 9
    %p33 = por %p31, %p32
    %p34 = scmp.ne.s32.totalorder %s23, %s24
    %p35 = scmp.eq.s32.totalorder %s15, 0
    %p36 = por %p34, %p35
    %p37 = scmp.ne.s32.totalorder %s23, %s24
    %p38 = scmp.eq.s32.totalorder %s16, 9
    %p39 = por %p37, %p38
    %p41 = scmp.ne.s32.totalorder %s24, %s40
    %p42 = scmp.eq.s32.totalorder %s16, 0
    %p43 = por %p41, %p42
    %s45 = sadd.s32 %s44, 1
    %p48 = scmp.eq.s32.totalorder %s10, 9
    %p49 = scmp.ne.s32.totalorder %s44, %s46
    %p50 = scmp.eq.s32.totalorder %s10, 0
    %p51 = por %p49, %p50
    %p52 = scmp.ne.s32.totalorder %s44, %s46
    %p53 = scmp.eq.s32.totalorder %s15, 9
    %p54 = por %p52, %p53
    %p55 = scmp.ne.s32.totalorder %s46, %s47
    %p56 = scmp.eq.s32.totalorder %s15, 0
    %p57 = por %p55, %p56
    %p58 = scmp.ne.s32.totalorder %s46, %s47
    %p59 = scmp.eq.s32.totalorder %s16, 9
    %p60 = por %p58, %p59
    %p62 = scmp.ne.s32.totalorder %s47, %s61
    %p63 = scmp.eq.s32.totalorder %s16, 0
    %p64 = por %p62, %p63
    %s66 = sadd.s32 %s65, 1
    %p69 = scmp.eq.s32.totalorder %s10, 9
    %p70 = scmp.ne.s32.totalorder %s65, %s67
    %p71 = scmp.eq.s32.totalorder %s10, 0
    %p72 = por %p70, %p71
    %p73 = scmp.ne.s32.totalorder %s65, %s67
    %p74 = scmp.eq.s32.totalorder %s15, 9
    %p75 = por %p73, %p74
    %p76 = scmp.ne.s32.totalorder %s67, %s68
    %p77 = scmp.eq.s32.totalorder %s15, 0
    %p78 = por %p76, %p77
    %p79 = scmp.ne.s32.totalorder %s67, %s68
    %p80 = scmp.eq.s32.totalorder %s16, 9
    %p81 = por %p79, %p80
    %p83 = scmp.ne.s32.totalorder %s68, %s82
    %p84 = scmp.eq.s32.totalorder %s16, 0
    %p85 = por %p83, %p84
    %s87 = sadd.s32 %s86, 1
    %p90 = scmp.eq.s32.totalorder %s10, 9
    %p91 = scmp.ne.s32.totalorder %s86, %s88
    %p92 = scmp.eq.s32.totalorder %s10, 0
    %p93 = por %p91, %p92
    %p94 = scmp.ne.s32.totalorder %s86, %s88
    %p95 = scmp.eq.s32.totalorder %s15, 9
    %p96 = por %p94, %p95
    %p97 = scmp.ne.s32.totalorder %s88, %s89
    %p98 = scmp.eq.s32.totalorder %s15, 0
    %p99 = por %p97, %p98
    %p100 = scmp.ne.s32.totalorder %s88, %s89
    %p101 = scmp.eq.s32.totalorder %s16, 9
    %p102 = por %p100, %p101
    %p104 = scmp.ne.s32.totalorder %s89, %s103
    %p105 = scmp.eq.s32.totalorder %s16, 0
    %p106 = por %p104, %p105
    %p107 = scmp.le.s32.totalorder 1, %s10
    %p108 = scmp.lt.s32.totalorder %s10, 11
    %p109 = pnand %p107, %p108
    %p110 = pneg %p109
    // Predicated region
    $region9: #{seq2seq_forward.2} parent=5 // pred_check
      _
    $region10: #{seq2seq_forward.2} parent=5 // pred_check_branch
      %112 = sbr.rel (%p109) target = $region12
    $region11: #{seq2seq_forward.2} parent=5 // pred_region
      %s113 = ssub.s32 %s10, 1
      // Predicated region
      $region13: #{seq2seq_forward.2} parent=11 // pred_check
        %p114 = pneg %p57
      $region14: #{seq2seq_forward.2} parent=11 // pred_check_branch
        %116 = sbr.rel (%p114) target = $region16
      $region15: #{seq2seq_forward.2} parent=11 // pred_region
        _
      $region16: #{seq2seq_forward.2} parent=11 // pred_fallthru
        _
    $region12: #{seq2seq_forward.2} parent=5 // pred_fallthru
      _
    %p117 = scmp.lt.s32.totalorder %s10, 10
    // Predicated region
    $region17: #{seq2seq_forward.2} parent=5 // pred_check
      %p118 = pneg %p117
    $region18: #{seq2seq_forward.2} parent=5 // pred_check_branch
      %120 = sbr.rel (%p118) target = $region20
    $region19: #{seq2seq_forward.2} parent=5 // pred_region
      // Predicated region
      $region21: #{seq2seq_forward.2} parent=19 // pred_check
        %p121 = pneg %p30
      $region22: #{seq2seq_forward.2} parent=19 // pred_check_branch
        %123 = sbr.rel (%p121) target = $region24
      $region23: #{seq2seq_forward.2} parent=19 // pred_region
        %p124 = scmp.lt.s32.totalorder %s10, 9
        %s125 = scalar_select %p124, %s10, 9
        %s126 = smul.addr %s125, 4
        %s127 = smul.addr %s126, 8
        %s128 = scalar_lea.vmem %s0, %s127
      $region24: #{seq2seq_forward.2} parent=19 // pred_fallthru
        _
    $region20: #{seq2seq_forward.2} parent=5 // pred_fallthru
      _
    %p129 = scmp.le.s32.totalorder 1, %s10
    %p130 = scmp.lt.s32.totalorder %s10, 11
    %p131 = pnand %p129, %p130
    %p132 = pneg %p131
    // Predicated region
    $region25: #{seq2seq_forward.2} parent=5 // pred_check
      _
    $region26: #{seq2seq_forward.2} parent=5 // pred_check_branch
      %134 = sbr.rel (%p131) target = $region28
    $region27: #{seq2seq_forward.2} parent=5 // pred_region
      %s135 = ssub.s32 %s10, 1
      %p136 = scmp.lt.s32.totalorder %s15, 9
      %s137 = scalar_select %p136, %s15, 9
      %s138 = smul.addr %s137, 4
      %s139 = smul.addr %s138, 8
      %s140 = scalar_lea.vmem %s0, %s139
      %p141 = pneg %p36
      %p142 = pneg %p33
      %p143 = pneg %p57
      %p144 = pneg %p54
      %p145 = pneg %p78
      %p146 = pneg %p75
      %p147 = pneg %p99
      %p148 = pneg %p96
      %p149 = scmp.lt.s32.totalorder %s15, 9
      %s150 = scalar_select %p149, %s15, 9
      %s151 = smul.addr %s150, 4
      %s152 = smul.addr %s151, 8
      %s153 = scalar_lea.vmem %s0, %s152
      %p155 = scmp.eq.s32.totalorder %s15, 0
      // Predicated region
      $region29: #{seq2seq_forward.2} parent=27 // pred_check
        %p156 = pneg %p155
      $region30: #{seq2seq_forward.2} parent=27 // pred_check_branch
        %158 = sbr.rel (%p156) target = $region32
      $region31: #{seq2seq_forward.2} parent=27 // pred_region
        %159 = vst [vmem:[%s2] sm:$0xff] 0.0
        %160 = vst [vmem:[%s3] sm:$0xff] 0.0
      $region32: #{seq2seq_forward.2} parent=27 // pred_fallthru
        _
      %v161 = vld [vmem:[%s2] sm:$0xff]
      %v162 = vld [vmem:[%s3] sm:$0xff]
      %v163 = vld [vmem:[%s153] sm:$0xff]
      %v164 = vld [vmem:[%s153 + $0x8] sm:$0xff]
      %v165 = vld [vmem:[%s153 + $0x10] sm:$0xff]
      %v166 = vld [vmem:[%s153 + $0x18] sm:$0xff]
      %v167 = vpack.c.bf16 %v161, %v161
      %v168 = vld [vmem:[%s1] sm:$0xff]
      %v169 = vld [vmem:[%s1 + $0x8] sm:$0xff]
      %v170 = vld [vmem:[%s1 + $0x10] sm:$0xff]
      %v171 = vld [vmem:[%s1 + $0x18] sm:$0xff]
      %v172 = vld [vmem:[%s1 + $0x20] sm:$0xff]
      %v173 = vld [vmem:[%s1 + $0x28] sm:$0xff]
      %v174 = vld [vmem:[%s1 + $0x30] sm:$0xff]
      %v175 = vld [vmem:[%s1 + $0x38] sm:$0xff]
      %v176 = vld [vmem:[%s1 + $0x40] sm:$0xff]
      %v177 = vld [vmem:[%s1 + $0x48] sm:$0xff]
      %v178 = vld [vmem:[%s1 + $0x50] sm:$0xff]
      %v179 = vld [vmem:[%s1 + $0x58] sm:$0xff]
      %v180 = vld [vmem:[%s1 + $0x60] sm:$0xff]
      %v181 = vld [vmem:[%s1 + $0x68] sm:$0xff]
      %v182 = vld [vmem:[%s1 + $0x70] sm:$0xff]
      %v183 = vld [vmem:[%s1 + $0x78] sm:$0xff]
      %v184 = vld [vmem:[%s1 + $0x80] sm:$0xff]
      %v185 = vld [vmem:[%s1 + $0x88] sm:$0xff]
      %v186 = vld [vmem:[%s1 + $0x90] sm:$0xff]
      %v187 = vld [vmem:[%s1 + $0x98] sm:$0xff]
      %v188 = vld [vmem:[%s1 + $0xa0] sm:$0xff]
      %v189 = vld [vmem:[%s1 + $0xa8] sm:$0xff]
      %v190 = vld [vmem:[%s1 + $0xb0] sm:$0xff]
      %v191 = vld [vmem:[%s1 + $0xb8] sm:$0xff]
      %v192 = vld [vmem:[%s1 + $0xc0] sm:$0xff]
      %v193 = vld [vmem:[%s1 + $0xc8] sm:$0xff]
      %v194 = vld [vmem:[%s1 + $0xd0] sm:$0xff]
      %v195 = vld [vmem:[%s1 + $0xd8] sm:$0xff]
      %v196 = vld [vmem:[%s1 + $0xe0] sm:$0xff]
      %v197 = vld [vmem:[%s1 + $0xe8] sm:$0xff]
      %v198 = vld [vmem:[%s1 + $0xf0] sm:$0xff]
      %v199 = vld [vmem:[%s1 + $0xf8] sm:$0xff]
      %v232 = vunpack.c.l.b16 %v168
      %v233 = vunpack.c.h.b16 %v168
      %v234 = vunpack.c.l.b16 %v169
      %v235 = vunpack.c.h.b16 %v169
      %v236 = vunpack.c.l.b16 %v170
      %v237 = vunpack.c.h.b16 %v170
      %v238 = vunpack.c.l.b16 %v171
      %v239 = vunpack.c.h.b16 %v171
      %v240 = vunpack.c.l.b16 %v172
      %v241 = vunpack.c.h.b16 %v172
      %v242 = vunpack.c.l.b16 %v173
      %v243 = vunpack.c.h.b16 %v173
      %v244 = vunpack.c.l.b16 %v174
      %v245 = vunpack.c.h.b16 %v174
      %v246 = vunpack.c.l.b16 %v175
      %v247 = vunpack.c.h.b16 %v175
      %v248 = vunpack.c.l.b16 %v176
      %v249 = vunpack.c.h.b16 %v176
      %v250 = vunpack.c.l.b16 %v177
      %v251 = vunpack.c.h.b16 %v177
      %v252 = vunpack.c.l.b16 %v178
      %v253 = vunpack.c.h.b16 %v178
      %v254 = vunpack.c.l.b16 %v179
      %v255 = vunpack.c.h.b16 %v179
      %v256 = vunpack.c.l.b16 %v180
      %v257 = vunpack.c.h.b16 %v180
      %v258 = vunpack.c.l.b16 %v181
      %v259 = vunpack.c.h.b16 %v181
      %v260 = vunpack.c.l.b16 %v182
      %v261 = vunpack.c.h.b16 %v182
      %v262 = vunpack.c.l.b16 %v183
      %v263 = vunpack.c.h.b16 %v183
      %v264 = vunpack.c.l.b16 %v184
      %v265 = vunpack.c.h.b16 %v184
      %v266 = vunpack.c.l.b16 %v185
      %v267 = vunpack.c.h.b16 %v185
      %v268 = vunpack.c.l.b16 %v186
      %v269 = vunpack.c.h.b16 %v186
      %v270 = vunpack.c.l.b16 %v187
      %v271 = vunpack.c.h.b16 %v187
      %v272 = vunpack.c.l.b16 %v188
      %v273 = vunpack.c.h.b16 %v188
      %v274 = vunpack.c.l.b16 %v189
      %v275 = vunpack.c.h.b16 %v189
      %v276 = vunpack.c.l.b16 %v190
      %v277 = vunpack.c.h.b16 %v190
      %v278 = vunpack.c.l.b16 %v191
      %v279 = vunpack.c.h.b16 %v191
      %v280 = vunpack.c.l.b16 %v192
      %v281 = vunpack.c.h.b16 %v192
      %v282 = vunpack.c.l.b16 %v193
      %v283 = vunpack.c.h.b16 %v193
      %v284 = vunpack.c.l.b16 %v194
      %v285 = vunpack.c.h.b16 %v194
      %v286 = vunpack.c.l.b16 %v195
      %v287 = vunpack.c.h.b16 %v195
      %v288 = vunpack.c.l.b16 %v196
      %v289 = vunpack.c.h.b16 %v196
      %v290 = vunpack.c.l.b16 %v197
      %v291 = vunpack.c.h.b16 %v197
      %v292 = vunpack.c.l.b16 %v198
      %v293 = vunpack.c.h.b16 %v198
      %v294 = vunpack.c.l.b16 %v199
      %v295 = vunpack.c.h.b16 %v199
      %v296 = vpack.c.b16 %v236, %v232
      %v297 = vpack.c.b16 %v237, %v233
      %v298 = vpack.c.b16 %v238, %v234
      %v299 = vpack.c.b16 %v239, %v235
      %v300 = vpack.c.b16 %v244, %v240
      %v301 = vpack.c.b16 %v245, %v241
      %v302 = vpack.c.b16 %v246, %v242
      %v303 = vpack.c.b16 %v247, %v243
      %v304 = vpack.c.b16 %v252, %v248
      %v305 = vpack.c.b16 %v253, %v249
      %v306 = vpack.c.b16 %v254, %v250
      %v307 = vpack.c.b16 %v255, %v251
      %v308 = vpack.c.b16 %v260, %v256
      %v309 = vpack.c.b16 %v261, %v257
      %v310 = vpack.c.b16 %v262, %v258
      %v311 = vpack.c.b16 %v263, %v259
      %v312 = vpack.c.b16 %v268, %v264
      %v313 = vpack.c.b16 %v269, %v265
      %v314 = vpack.c.b16 %v270, %v266
      %v315 = vpack.c.b16 %v271, %v267
      %v316 = vpack.c.b16 %v276, %v272
      %v317 = vpack.c.b16 %v277, %v273
      %v318 = vpack.c.b16 %v278, %v274
      %v319 = vpack.c.b16 %v279, %v275
      %v320 = vpack.c.b16 %v284, %v280
      %v321 = vpack.c.b16 %v285, %v281
      %v322 = vpack.c.b16 %v286, %v282
      %v323 = vpack.c.b16 %v287, %v283
      %v324 = vpack.c.b16 %v292, %v288
      %v325 = vpack.c.b16 %v293, %v289
      %v326 = vpack.c.b16 %v294, %v290
      %v327 = vpack.c.b16 %v295, %v291
      %360 = vmatprep.subr.bf16.mxu0 %v325
      %361 = vmatpush1.bf16.msra.mxu0 %v324
      %362 = vmatprep.subr.bf16.mxu0 %v321
      %363 = vmatpush1.bf16.msra.mxu0 %v320
      %364 = vmatprep.subr.bf16.mxu0 %v317
      %365 = vmatpush1.bf16.msra.mxu0 %v316
      %366 = vmatprep.subr.bf16.mxu0 %v313
      %367 = vmatpush1.bf16.msra.mxu0 %v312
      %368 = vmatprep.subr.bf16.mxu0 %v309
      %369 = vmatpush1.bf16.msra.mxu0 %v308
      %370 = vmatprep.subr.bf16.mxu0 %v305
      %371 = vmatpush1.bf16.msra.mxu0 %v304
      %372 = vmatprep.subr.bf16.mxu0 %v301
      %373 = vmatpush1.bf16.msra.mxu0 %v300
      %374 = vmatprep.subr.bf16.mxu0 %v297
      %375 = vmatpush1.bf16.msra.mxu0 %v296
      %376 = vmatprep.subr.bf16.mxu0 0
      %377 = vmatpush2.bf16.msra.mxu0 0
      %378 = vmatprep.subr.bf16.mxu0 0
      %379 = vmatpush2.bf16.msra.mxu0 0
      %380 = vmatprep.subr.bf16.mxu0 0
      %381 = vmatpush2.bf16.msra.mxu0 0
      %382 = vmatprep.subr.bf16.mxu0 0
      %383 = vmatpush2.bf16.msra.mxu0 0
      %384 = vmatprep.subr.bf16.mxu0 0
      %385 = vmatpush2.bf16.msra.mxu0 0
      %386 = vmatprep.subr.bf16.mxu0 0
      %387 = vmatpush2.bf16.msra.mxu0 0
      %388 = vmatprep.subr.bf16.mxu0 0
      %389 = vmatpush2.bf16.msra.mxu0 0
      %390 = vmatprep.subr.bf16.mxu0 0
      %391 = vmatpush2.bf16.msra.mxu0 0
      %392 = vmatprep.mubr.bf16.mxu0 0
      %393 = vmatmul.mubr.bf16.gmra.mxu0 %v167
      %v394 = vpop.f32.mrf.mxu0
      %v395 = vadd.f32 0.0, %v394
      %v396 = vpop.f32.mrf.mxu0
      %v397 = vadd.f32 0.0, %v396
      %v398 = vpop.f32.mrf.mxu0
      %v399 = vpop.f32.mrf.mxu0
      %400 = vdwg.mxu0
      %401 = vmatprep.subr.bf16.mxu0 %v327
      %402 = vmatpush1.bf16.msra.mxu0 %v326
      %403 = vmatprep.subr.bf16.mxu0 %v323
      %404 = vmatpush1.bf16.msra.mxu0 %v322
      %405 = vmatprep.subr.bf16.mxu0 %v319
      %406 = vmatpush1.bf16.msra.mxu0 %v318
      %407 = vmatprep.subr.bf16.mxu0 %v315
      %408 = vmatpush1.bf16.msra.mxu0 %v314
      %409 = vmatprep.subr.bf16.mxu0 %v311
      %410 = vmatpush1.bf16.msra.mxu0 %v310
      %411 = vmatprep.subr.bf16.mxu0 %v307
      %412 = vmatpush1.bf16.msra.mxu0 %v306
      %413 = vmatprep.subr.bf16.mxu0 %v303
      %414 = vmatpush1.bf16.msra.mxu0 %v302
      %415 = vmatprep.subr.bf16.mxu0 %v299
      %416 = vmatpush1.bf16.msra.mxu0 %v298
      %417 = vmatprep.subr.bf16.mxu0 0
      %418 = vmatpush2.bf16.msra.mxu0 0
      %419 = vmatprep.subr.bf16.mxu0 0
      %420 = vmatpush2.bf16.msra.mxu0 0
      %421 = vmatprep.subr.bf16.mxu0 0
      %422 = vmatpush2.bf16.msra.mxu0 0
      %423 = vmatprep.subr.bf16.mxu0 0
      %424 = vmatpush2.bf16.msra.mxu0 0
      %425 = vmatprep.subr.bf16.mxu0 0
      %426 = vmatpush2.bf16.msra.mxu0 0
      %427 = vmatprep.subr.bf16.mxu0 0
      %428 = vmatpush2.bf16.msra.mxu0 0
      %429 = vmatprep.subr.bf16.mxu0 0
      %430 = vmatpush2.bf16.msra.mxu0 0
      %431 = vmatprep.subr.bf16.mxu0 0
      %432 = vmatpush2.bf16.msra.mxu0 0
      %433 = vmatprep.mubr.bf16.mxu0 0
      %434 = vmatmul.mubr.bf16.gmra.mxu0 %v167
      %v435 = vpop.f32.mrf.mxu0
      %v436 = vadd.f32 0.0, %v435
      %v437 = vpop.f32.mrf.mxu0
      %v438 = vadd.f32 0.0, %v437
      %v439 = vpop.f32.mrf.mxu0
      %v440 = vpop.f32.mrf.mxu0
      %441 = vdwg.mxu0
      %v442 = vadd.f32 %v163, %v395
      %v443 = vadd.f32 %v164, %v397
      %v444 = vadd.f32 %v165, %v436
      %v445 = vadd.f32 %v166, %v438
      %v446 = vxor.u32 %v442, 2147483648
      %v447 = vxor.u32 %v443, 2147483648
      %v448 = vxor.u32 %v444, 2147483648
      %v449 = vmul.f32 %v446, 1.442695
      %v450 = vpow.pop %v449
      %v451 = vmul.f32 %v447, 1.442695
      %v452 = vpow.pop %v451
      %v453 = vmul.f32 %v448, 1.442695
      %v454 = vpow.pop %v453
      %v455 = vadd.f32 %v450, 1.0
      %v456 = vadd.f32 %v452, 1.0
      %v457 = vadd.f32 %v454, 1.0
      %v458 = vrcp.pop %v455
      %v459 = vmul.f32 1.0, %v458
      %v460 = vrcp.pop %v456
      %v461 = vmul.f32 1.0, %v460
      %v462 = vrcp.pop %v457
      %v463 = vmul.f32 1.0, %v462
      %v464 = vtanh.pop %v445
      %v465 = vmul.f32 %v461, %v162
      %v466 = vmul.f32 %v459, %v464
      %v467 = vadd.f32 %v465, %v466
      %v468 = vtanh.pop %v467
      %v469 = vmul.f32 %v463, %v468
      %470 = vst [vmem:[%s2] sm:$0xff] %v469
      %471 = vst [vmem:[%s3] sm:$0xff] %v467
      // Predicated region
      $region33: #{seq2seq_forward.2} parent=27 // pred_check
        %p472 = pneg %p75
      $region34: #{seq2seq_forward.2} parent=27 // pred_check_branch
        %474 = sbr.rel (%p472) target = $region36
      $region35: #{seq2seq_forward.2} parent=27 // pred_region
        _
      $region36: #{seq2seq_forward.2} parent=27 // pred_fallthru
        _
      // Predicated region
      $region37: #{seq2seq_forward.2} parent=27 // pred_check
        %p475 = pneg %p96
      $region38: #{seq2seq_forward.2} parent=27 // pred_check_branch
        %477 = sbr.rel (%p475) target = $region40
      $region39: #{seq2seq_forward.2} parent=27 // pred_region
        _
      $region40: #{seq2seq_forward.2} parent=27 // pred_fallthru
        _
      // Predicated region
      $region41: #{seq2seq_forward.2} parent=27 // pred_check
        %p478 = pneg %p75
      $region42: #{seq2seq_forward.2} parent=27 // pred_check_branch
        %480 = sbr.rel (%p478) target = $region44
      $region43: #{seq2seq_forward.2} parent=27 // pred_region
        _
      $region44: #{seq2seq_forward.2} parent=27 // pred_fallthru
        _
      // Predicated region
      $region45: #{seq2seq_forward.2} parent=27 // pred_check
        %p481 = pneg %p96
      $region46: #{seq2seq_forward.2} parent=27 // pred_check_branch
        %483 = sbr.rel (%p481) target = $region48
      $region47: #{seq2seq_forward.2} parent=27 // pred_region
        _
      $region48: #{seq2seq_forward.2} parent=27 // pred_fallthru
        _
    $region28: #{seq2seq_forward.2} parent=5 // pred_fallthru
      _
    %p484 = scmp.le.s32.totalorder 2, %s10
    // Predicated region
    $region49: #{seq2seq_forward.2} parent=5 // pred_check
      %p485 = pneg %p484
    $region50: #{seq2seq_forward.2} parent=5 // pred_check_branch
      %487 = sbr.rel (%p485) target = $region52
    $region51: #{seq2seq_forward.2} parent=5 // pred_region
      %s488 = ssub.s32 %s10, 2
    $region52: #{seq2seq_forward.2} parent=5 // pred_fallthru
      _
  $region6: #{seq2seq_forward.2} parent=0 // loop_footer
    %s14 = sadd.s32 1, %s10
  $region7: #{seq2seq_forward.2} parent=0 // loop_footer_branch
    %9 = sbr.rel target = $region3
  $region8: #{seq2seq_forward.2} parent=0 // loop_exit
    _

// kernel: seq2seq_forward.3
$region0: #{seq2seq_forward.3}
  #allocation0 [shape = 'u32[]', space=smem, size = 0x4, offset = 0x4, fixed_abs, tag = 'smem constant byte address 0x4 - core index']
  #allocation1 [shape = 'u32[144,128]{1,0:T(1,128)}', space=vmem, size = 0x12000, scoped, tag = 'internal scratch']
  #allocation2 [shape = 'f32[8,128]{1,0:T(8,128)}', space=vmem, size = 0x1000, scoped, tag = 'scratch operand']
  #allocation3 [shape = 'f32[8,128]{1,0:T(8,128)}', space=vmem, size = 0x1000, scoped, tag = 'scratch operand']
  #allocation4 [shape = 'f32[8,512]{1,0:T(8,128)}', space=vmem, size = 0x4000, scoped, tag = 'scratch operand']
  #allocation5 [shape = 's32[1]{0}', space=sflag, size = 0x4, scoped, tag = 'scoped memory for seq2seq_forward.3']
  #allocation6 [shape = 'u8[512]{0}', space=smem, size = 0x200, scoped, tag = 'prefetched SMEM operand 0']
  %s0 = inlined_call_operand.vmem [shape: s32[8], index: 0, kind: input, shape index: {}]
  %s1 = inlined_call_operand.vmem [shape: f32[8,8,512], index: 1, kind: input, shape index: {}]
  %s2 = inlined_call_operand.vmem [shape: f32[8,128], index: 2, kind: input, shape index: {}]
  %s3 = inlined_call_operand.vmem [shape: f32[8,128], index: 3, kind: input, shape index: {}]
  %s4 = inlined_call_operand.vmem [shape: bf16[128,512], index: 4, kind: input, shape index: {}]
  %s5 = inlined_call_operand.vmem [shape: f32[1,512], index: 5, kind: input, shape index: {}]
  %s6 = inlined_call_operand.vmem [shape: bf16[128,512], index: 6, kind: input, shape index: {}]
  %s7 = inlined_call_operand.vmem [shape: bf16[128,128], index: 7, kind: input, shape index: {}]
  %s8 = inlined_call_operand.vmem [shape: f32[1,128], index: 8, kind: input, shape index: {}]
  %s9 = inlined_call_operand.hbm [shape: f32[8,8,128], index: 9, kind: output, shape index: {}]
  %s10 = sld [smem:[#allocation0]]
  $region81: #{seq2seq_forward.3} parent=0
    _
  %s12 = ssub.s32 1, %s10
  %s13 = scalar_select 0, %s12, %s10
  %s14 = sshll.u32 %s0, 4
  %s15 = int_to_ptr.vmem [resolvable:$true] %s14
  %17 = dma.vmem_to_smem %s15, 16, [#allocation6], [#allocation5]
  %18 = dma.done [#allocation5], 16
  %19 = sfence
  $region1: #{seq2seq_forward.3} parent=0
    #allocation7 [shape = 'u8[8192]{0}', space=vmem, size = 0x2000, scoped, tag = 'output window, operand 0']
    #allocation8 [shape = 's32[2]{0}', space=sflag, size = 0x8, scoped, tag = 'scoped memory for seq2seq_forward.3']
    %20 = vsyncpa [#allocation8], 0
    %s21 = scalar_lea.sflag [#allocation8], 1
    %22 = vsyncpa %s21, 0
    loop: start=0, step=1, limit=10
    $region2: #{seq2seq_forward.3} parent=1 // loop_pre_header
      _
    $region3: #{seq2seq_forward.3} parent=1 // loop_header
      %s24 = sphi 0, %s28
      %p25 = scmp.ge.s32.totalorder %s24, 10
      %s34 = sphi 0, %s36
      %s37 = sphi 0, %s34
      %s38 = sphi 0, %s37
      %s54 = sphi 0, %s38
      %s58 = sphi 0, %s58
      %s60 = sphi 0, %s58
      %s61 = sphi 0, %s60
      %s75 = sphi 0, %s61
      %s79 = sphi 0, %s79
      %s81 = sphi 0, %s79
      %s82 = sphi 0, %s81
      %s96 = sphi 0, %s82
      %s100 = sphi 0, %s100
      %s102 = sphi 0, %s100
      %s103 = sphi 0, %s102
      %s117 = sphi 0, %s103
      %s121 = sphi 0, %s121
      %s123 = sphi 0, %s121
      %s124 = sphi 0, %s123
      %s138 = sphi 0, %s124
      %s142 = sphi 0, %s142
      %s144 = sphi 0, %s142
      %s145 = sphi 0, %s144
      %s159 = sphi 0, %s145
      %s163 = sphi 0, %s163
      %s165 = sphi 0, %s163
      %s166 = sphi 0, %s165
      %s180 = sphi 0, %s166
      %s184 = sphi 0, %s184
      %s186 = sphi 0, %s184
      %s187 = sphi 0, %s186
      %s201 = sphi 0, %s187
      %s207 = sphi 0, %s209
      %s210 = sphi 0, %s207
      %s211 = sphi 0, %s210
      %s227 = sphi 0, %s211
    $region4: #{seq2seq_forward.3} parent=1 // loop_header_branch
      %27 = sbr.rel (%p25) target = $region8
    $region5: #{seq2seq_forward.3} parent=1 // loop_body
      %s29 = ssub.s32 %s24, 1
      %s30 = ssub.s32 %s24, 2
      %s31 = sadd.s32 %s24, 1
      %s32 = ssub.s32 %s24, %s31
      %p33 = scmp.eq.s32.totalorder %s32, 0
      %s35 = sadd.s32 %s34, 1
      %s36 = scalar_select %p33, %s34, %s35
      %p39 = pneg %p33
      %p40 = scmp.eq.s32.totalorder %s24, 7
      %p41 = por %p39, %p40
      %p42 = scmp.ne.s32.totalorder %s34, %s37
      %p43 = scmp.eq.s32.totalorder %s24, 0
      %p44 = por %p42, %p43
      %p45 = scmp.ne.s32.totalorder %s34, %s37
      %p46 = scmp.eq.s32.totalorder %s29, 7
      %p47 = por %p45, %p46
      %p48 = scmp.ne.s32.totalorder %s37, %s38
      %p49 = scmp.eq.s32.totalorder %s29, 0
      %p50 = por %p48, %p49
      %p51 = scmp.ne.s32.totalorder %s37, %s38
      %p52 = scmp.eq.s32.totalorder %s30, 7
      %p53 = por %p51, %p52
      %p55 = scmp.ne.s32.totalorder %s38, %s54
      %p56 = scmp.eq.s32.totalorder %s30, 0
      %p57 = por %p55, %p56
      %s59 = sadd.s32 %s58, 1
      %p62 = scmp.eq.s32.totalorder %s24, 7
      %p63 = scmp.ne.s32.totalorder %s58, %s60
      %p64 = scmp.eq.s32.totalorder %s24, 0
      %p65 = por %p63, %p64
      %p66 = scmp.ne.s32.totalorder %s58, %s60
      %p67 = scmp.eq.s32.totalorder %s29, 7
      %p68 = por %p66, %p67
      %p69 = scmp.ne.s32.totalorder %s60, %s61
      %p70 = scmp.eq.s32.totalorder %s29, 0
      %p71 = por %p69, %p70
      %p72 = scmp.ne.s32.totalorder %s60, %s61
      %p73 = scmp.eq.s32.totalorder %s30, 7
      %p74 = por %p72, %p73
      %p76 = scmp.ne.s32.totalorder %s61, %s75
      %p77 = scmp.eq.s32.totalorder %s30, 0
      %p78 = por %p76, %p77
      %s80 = sadd.s32 %s79, 1
      %p83 = scmp.eq.s32.totalorder %s24, 7
      %p84 = scmp.ne.s32.totalorder %s79, %s81
      %p85 = scmp.eq.s32.totalorder %s24, 0
      %p86 = por %p84, %p85
      %p87 = scmp.ne.s32.totalorder %s79, %s81
      %p88 = scmp.eq.s32.totalorder %s29, 7
      %p89 = por %p87, %p88
      %p90 = scmp.ne.s32.totalorder %s81, %s82
      %p91 = scmp.eq.s32.totalorder %s29, 0
      %p92 = por %p90, %p91
      %p93 = scmp.ne.s32.totalorder %s81, %s82
      %p94 = scmp.eq.s32.totalorder %s30, 7
      %p95 = por %p93, %p94
      %p97 = scmp.ne.s32.totalorder %s82, %s96
      %p98 = scmp.eq.s32.totalorder %s30, 0
      %p99 = por %p97, %p98
      %s101 = sadd.s32 %s100, 1
      %p104 = scmp.eq.s32.totalorder %s24, 7
      %p105 = scmp.ne.s32.totalorder %s100, %s102
      %p106 = scmp.eq.s32.totalorder %s24, 0
      %p107 = por %p105, %p106
      %p108 = scmp.ne.s32.totalorder %s100, %s102
      %p109 = scmp.eq.s32.totalorder %s29, 7
      %p110 = por %p108, %p109
      %p111 = scmp.ne.s32.totalorder %s102, %s103
      %p112 = scmp.eq.s32.totalorder %s29, 0
      %p113 = por %p111, %p112
      %p114 = scmp.ne.s32.totalorder %s102, %s103
      %p115 = scmp.eq.s32.totalorder %s30, 7
      %p116 = por %p114, %p115
      %p118 = scmp.ne.s32.totalorder %s103, %s117
      %p119 = scmp.eq.s32.totalorder %s30, 0
      %p120 = por %p118, %p119
      %s122 = sadd.s32 %s121, 1
      %p125 = scmp.eq.s32.totalorder %s24, 7
      %p126 = scmp.ne.s32.totalorder %s121, %s123
      %p127 = scmp.eq.s32.totalorder %s24, 0
      %p128 = por %p126, %p127
      %p129 = scmp.ne.s32.totalorder %s121, %s123
      %p130 = scmp.eq.s32.totalorder %s29, 7
      %p131 = por %p129, %p130
      %p132 = scmp.ne.s32.totalorder %s123, %s124
      %p133 = scmp.eq.s32.totalorder %s29, 0
      %p134 = por %p132, %p133
      %p135 = scmp.ne.s32.totalorder %s123, %s124
      %p136 = scmp.eq.s32.totalorder %s30, 7
      %p137 = por %p135, %p136
      %p139 = scmp.ne.s32.totalorder %s124, %s138
      %p140 = scmp.eq.s32.totalorder %s30, 0
      %p141 = por %p139, %p140
      %s143 = sadd.s32 %s142, 1
      %p146 = scmp.eq.s32.totalorder %s24, 7
      %p147 = scmp.ne.s32.totalorder %s142, %s144
      %p148 = scmp.eq.s32.totalorder %s24, 0
      %p149 = por %p147, %p148
      %p150 = scmp.ne.s32.totalorder %s142, %s144
      %p151 = scmp.eq.s32.totalorder %s29, 7
      %p152 = por %p150, %p151
      %p153 = scmp.ne.s32.totalorder %s144, %s145
      %p154 = scmp.eq.s32.totalorder %s29, 0
      %p155 = por %p153, %p154
      %p156 = scmp.ne.s32.totalorder %s144, %s145
      %p157 = scmp.eq.s32.totalorder %s30, 7
      %p158 = por %p156, %p157
      %p160 = scmp.ne.s32.totalorder %s145, %s159
      %p161 = scmp.eq.s32.totalorder %s30, 0
      %p162 = por %p160, %p161
      %s164 = sadd.s32 %s163, 1
      %p167 = scmp.eq.s32.totalorder %s24, 7
      %p168 = scmp.ne.s32.totalorder %s163, %s165
      %p169 = scmp.eq.s32.totalorder %s24, 0
      %p170 = por %p168, %p169
      %p171 = scmp.ne.s32.totalorder %s163, %s165
      %p172 = scmp.eq.s32.totalorder %s29, 7
      %p173 = por %p171, %p172
      %p174 = scmp.ne.s32.totalorder %s165, %s166
      %p175 = scmp.eq.s32.totalorder %s29, 0
      %p176 = por %p174, %p175
      %p177 = scmp.ne.s32.totalorder %s165, %s166
      %p178 = scmp.eq.s32.totalorder %s30, 7
      %p179 = por %p177, %p178
      %p181 = scmp.ne.s32.totalorder %s166, %s180
      %p182 = scmp.eq.s32.totalorder %s30, 0
      %p183 = por %p181, %p182
      %s185 = sadd.s32 %s184, 1
      %p188 = scmp.eq.s32.totalorder %s24, 7
      %p189 = scmp.ne.s32.totalorder %s184, %s186
      %p190 = scmp.eq.s32.totalorder %s24, 0
      %p191 = por %p189, %p190
      %p192 = scmp.ne.s32.totalorder %s184, %s186
      %p193 = scmp.eq.s32.totalorder %s29, 7
      %p194 = por %p192, %p193
      %p195 = scmp.ne.s32.totalorder %s186, %s187
      %p196 = scmp.eq.s32.totalorder %s29, 0
      %p197 = por %p195, %p196
      %p198 = scmp.ne.s32.totalorder %s186, %s187
      %p199 = scmp.eq.s32.totalorder %s30, 7
      %p200 = por %p198, %p199
      %p202 = scmp.ne.s32.totalorder %s187, %s201
      %p203 = scmp.eq.s32.totalorder %s30, 0
      %p204 = por %p202, %p203
      %s205 = ssub.s32 %s24, %s31
      %p206 = scmp.eq.s32.totalorder %s205, 0
      %s208 = sadd.s32 %s207, 1
      %s209 = scalar_select %p206, %s207, %s208
      %p212 = pneg %p206
      %p213 = scmp.eq.s32.totalorder %s24, 7
      %p214 = por %p212, %p213
      %p215 = scmp.ne.s32.totalorder %s207, %s210
      %p216 = scmp.eq.s32.totalorder %s24, 0
      %p217 = por %p215, %p216
      %p218 = scmp.ne.s32.totalorder %s207, %s210
      %p219 = scmp.eq.s32.totalorder %s29, 7
      %p220 = por %p218, %p219
      %p221 = scmp.ne.s32.totalorder %s210, %s211
      %p222 = scmp.eq.s32.totalorder %s29, 0
      %p223 = por %p221, %p222
      %p224 = scmp.ne.s32.totalorder %s210, %s211
      %p225 = scmp.eq.s32.totalorder %s30, 7
      %p226 = por %p224, %p225
      %p228 = scmp.ne.s32.totalorder %s211, %s227
      %p229 = scmp.eq.s32.totalorder %s30, 0
      %p230 = por %p228, %p229
      %p231 = scmp.le.s32.totalorder 1, %s24
      %p232 = scmp.lt.s32.totalorder %s24, 9
      %p233 = pnand %p231, %p232
      %p234 = pneg %p233
      // Predicated region
      $region9: #{seq2seq_forward.3} parent=5 // pred_check
        _
      $region10: #{seq2seq_forward.3} parent=5 // pred_check_branch
        %236 = sbr.rel (%p233) target = $region12
      $region11: #{seq2seq_forward.3} parent=5 // pred_region
        %s237 = ssub.s32 %s24, 1
        // Predicated region
        $region13: #{seq2seq_forward.3} parent=11 // pred_check
          %p238 = pneg %p71
        $region14: #{seq2seq_forward.3} parent=11 // pred_check_branch
          %240 = sbr.rel (%p238) target = $region16
        $region15: #{seq2seq_forward.3} parent=11 // pred_region
          _
        $region16: #{seq2seq_forward.3} parent=11 // pred_fallthru
          _
        // Predicated region
        $region17: #{seq2seq_forward.3} parent=11 // pred_check
          %p241 = pneg %p92
        $region18: #{seq2seq_forward.3} parent=11 // pred_check_branch
          %243 = sbr.rel (%p241) target = $region20
        $region19: #{seq2seq_forward.3} parent=11 // pred_region
          _
        $region20: #{seq2seq_forward.3} parent=11 // pred_fallthru
          _
        // Predicated region
        $region21: #{seq2seq_forward.3} parent=11 // pred_check
          %p244 = pneg %p113
        $region22: #{seq2seq_forward.3} parent=11 // pred_check_branch
          %246 = sbr.rel (%p244) target = $region24
        $region23: #{seq2seq_forward.3} parent=11 // pred_region
          _
        $region24: #{seq2seq_forward.3} parent=11 // pred_fallthru
          _
        // Predicated region
        $region25: #{seq2seq_forward.3} parent=11 // pred_check
          %p247 = pneg %p134
        $region26: #{seq2seq_forward.3} parent=11 // pred_check_branch
          %249 = sbr.rel (%p247) target = $region28
        $region27: #{seq2seq_forward.3} parent=11 // pred_region
          _
        $region28: #{seq2seq_forward.3} parent=11 // pred_fallthru
          _
        // Predicated region
        $region29: #{seq2seq_forward.3} parent=11 // pred_check
          %p250 = pneg %p155
        $region30: #{seq2seq_forward.3} parent=11 // pred_check_branch
          %252 = sbr.rel (%p250) target = $region32
        $region31: #{seq2seq_forward.3} parent=11 // pred_region
          _
        $region32: #{seq2seq_forward.3} parent=11 // pred_fallthru
          _
        // Predicated region
        $region33: #{seq2seq_forward.3} parent=11 // pred_check
          %p253 = pneg %p176
        $region34: #{seq2seq_forward.3} parent=11 // pred_check_branch
          %255 = sbr.rel (%p253) target = $region36
        $region35: #{seq2seq_forward.3} parent=11 // pred_region
          _
        $region36: #{seq2seq_forward.3} parent=11 // pred_fallthru
          _
        // Predicated region
        $region37: #{seq2seq_forward.3} parent=11 // pred_check
          %p256 = pneg %p197
        $region38: #{seq2seq_forward.3} parent=11 // pred_check_branch
          %258 = sbr.rel (%p256) target = $region40
        $region39: #{seq2seq_forward.3} parent=11 // pred_region
          _
        $region40: #{seq2seq_forward.3} parent=11 // pred_fallthru
          _
      $region12: #{seq2seq_forward.3} parent=5 // pred_fallthru
        _
      %p259 = scmp.lt.s32.totalorder %s24, 8
      // Predicated region
      $region41: #{seq2seq_forward.3} parent=5 // pred_check
        %p260 = pneg %p259
      $region42: #{seq2seq_forward.3} parent=5 // pred_check_branch
        %262 = sbr.rel (%p260) target = $region44
      $region43: #{seq2seq_forward.3} parent=5 // pred_region
        // Predicated region
        $region45: #{seq2seq_forward.3} parent=43 // pred_check
          %p263 = pneg %p44
        $region46: #{seq2seq_forward.3} parent=43 // pred_check_branch
          %265 = sbr.rel (%p263) target = $region48
        $region47: #{seq2seq_forward.3} parent=43 // pred_region
          %p266 = scmp.lt.s32.totalorder %s24, 7
          %s267 = scalar_select %p266, %s24, 7
          %s268 = smul.addr %s267, 4
          %s269 = smul.addr %s268, 8
          %s270 = scalar_lea.vmem %s1, %s269
        $region48: #{seq2seq_forward.3} parent=43 // pred_fallthru
          _
      $region44: #{seq2seq_forward.3} parent=5 // pred_fallthru
        _
      %p271 = scmp.le.s32.totalorder 1, %s24
      %p272 = scmp.lt.s32.totalorder %s24, 9
      %p273 = pnand %p271, %p272
      %p274 = pneg %p273
      // Predicated region
      $region49: #{seq2seq_forward.3} parent=5 // pred_check
        _
      $region50: #{seq2seq_forward.3} parent=5 // pred_check_branch
        %276 = sbr.rel (%p273) target = $region52
      $region51: #{seq2seq_forward.3} parent=5 // pred_region
        %s277 = ssub.s32 %s24, 1
        %p278 = scmp.lt.s32.totalorder %s29, 7
        %s279 = scalar_select %p278, %s29, 7
        %s280 = smul.addr %s279, 4
        %s281 = smul.addr %s280, 8
        %s282 = scalar_lea.vmem %s1, %s281
        %p283 = pneg %p50
        %p284 = pneg %p47
        %p285 = pneg %p71
        %p286 = pneg %p68
        %p287 = pneg %p92
        %p288 = pneg %p89
        %p289 = pneg %p113
        %p290 = pneg %p110
        %p291 = pneg %p134
        %p292 = pneg %p131
        %p293 = pneg %p155
        %p294 = pneg %p152
        %p295 = pneg %p176
        %p296 = pneg %p173
        %p297 = pneg %p197
        %p298 = pneg %p194
        %p299 = pneg %p223
        %p300 = pneg %p220
        %s301 = sand.u32 %s210, 1
        %s302 = scalar_lea.sflag [#allocation8], %s301
        %s303 = sand.u32 %s210, 1
        %s304 = smul.addr %s303, 8
        %s305 = scalar_lea.vmem [#allocation7], %s304
        %p306 = scmp.lt.s32.totalorder %s29, 7
        %s307 = scalar_select %p306, %s29, 7
        %s308 = smul.addr %s307, 4
        %s309 = smul.addr %s308, 8
        %s310 = scalar_lea.vmem %s1, %s309
        %p312 = scmp.eq.s32.totalorder %s29, 0
        // Predicated region
        $region53: #{seq2seq_forward.3} parent=51 // pred_check
          %p313 = pneg %p312
        $region54: #{seq2seq_forward.3} parent=51 // pred_check_branch
          %315 = sbr.rel (%p313) target = $region56
        $region55: #{seq2seq_forward.3} parent=51 // pred_region
          %v316 = vld [vmem:[%s2] sm:$0xff]
          %317 = vst [vmem:[#allocation2] sm:$0xff] %v316
          %v318 = vld [vmem:[%s3] sm:$0xff]
          %319 = vst [vmem:[#allocation3] sm:$0xff] %v318
          %v320 = vld [vmem:[%s310] sm:$0xff]
          %v321 = vld [vmem:[%s310 + $0x8] sm:$0xff]
          %v322 = vld [vmem:[%s310 + $0x10] sm:$0xff]
          %v323 = vld [vmem:[%s310 + $0x18] sm:$0xff]
          %324 = vst [vmem:[#allocation4] sm:$0xff] %v320
          %325 = vst [vmem:[#allocation4 + $0x8] sm:$0xff] %v321
          %326 = vst [vmem:[#allocation4 + $0x10] sm:$0xff] %v322
          %327 = vst [vmem:[#allocation4 + $0x18] sm:$0xff] %v323
          %328 = vst [vmem:[%s305] sm:$0xff] 0.0
        $region56: #{seq2seq_forward.3} parent=51 // pred_fallthru
          _
        %p329 = scmp.gt.s32.totalorder %s29, 0
        // Predicated region
        $region57: #{seq2seq_forward.3} parent=51 // pred_check
          %p330 = pneg %p329
        $region58: #{seq2seq_forward.3} parent=51 // pred_check_branch
          %332 = sbr.rel (%p330) target = $region60
        $region59: #{seq2seq_forward.3} parent=51 // pred_region
          %v333 = vld [vmem:[#allocation2] sm:$0xff]
          %v334 = vld [vmem:[#allocation3] sm:$0xff]
          %v335 = vld [vmem:[#allocation4] sm:$0xff]
          %v336 = vld [vmem:[#allocation4 + $0x8] sm:$0xff]
          %v337 = vld [vmem:[#allocation4 + $0x10] sm:$0xff]
          %v338 = vld [vmem:[#allocation4 + $0x18] sm:$0xff]
          %v339 = vld [vmem:[%s5] sm:$0xf]
          %v341 = vlaneseq
          %v342 = vshrl.u32 %v341, 7
          %v343 = vsub.s32 0, %v342
          %v344 = vrot.slane %v339, %v343
          %v345 = vlaneseq
          %v346 = vshrl.u32 %v345, 7
          %v347 = vsub.s32 1, %v346
          %v348 = vrot.slane %v339, %v347
          %v349 = vlaneseq
          %v350 = vshrl.u32 %v349, 7
          %v351 = vsub.s32 2, %v350
          %v352 = vrot.slane %v339, %v351
          %v353 = vlaneseq
          %v354 = vshrl.u32 %v353, 7
          %v355 = vsub.s32 3, %v354
          %v356 = vrot.slane %v339, %v355
          %v361 = vadd.f32 %v335, %v344
          %v362 = vadd.f32 %v336, %v348
          %v363 = vadd.f32 %v337, %v352
          %v364 = vadd.f32 %v338, %v356
          %v365 = vpack.c.bf16 %v333, %v333
          %v366 = vld [vmem:[%s4] sm:$0xff]
          %v367 = vld [vmem:[%s4 + $0x8] sm:$0xff]
          %v368 = vld [vmem:[%s4 + $0x10] sm:$0xff]
          %v369 = vld [vmem:[%s4 + $0x18] sm:$0xff]
          %v370 = vld [vmem:[%s4 + $0x20] sm:$0xff]
          %v371 = vld [vmem:[%s4 + $0x28] sm:$0xff]
          %v372 = vld [vmem:[%s4 + $0x30] sm:$0xff]
          %v373 = vld [vmem:[%s4 + $0x38] sm:$0xff]
          %v374 = vld [vmem:[%s4 + $0x40] sm:$0xff]
          %v375 = vld [vmem:[%s4 + $0x48] sm:$0xff]
          %v376 = vld [vmem:[%s4 + $0x50] sm:$0xff]
          %v377 = vld [vmem:[%s4 + $0x58] sm:$0xff]
          %v378 = vld [vmem:[%s4 + $0x60] sm:$0xff]
          %v379 = vld [vmem:[%s4 + $0x68] sm:$0xff]
          %v380 = vld [vmem:[%s4 + $0x70] sm:$0xff]
          %v381 = vld [vmem:[%s4 + $0x78] sm:$0xff]
          %v382 = vld [vmem:[%s4 + $0x80] sm:$0xff]
          %v383 = vld [vmem:[%s4 + $0x88] sm:$0xff]
          %v384 = vld [vmem:[%s4 + $0x90] sm:$0xff]
          %v385 = vld [vmem:[%s4 + $0x98] sm:$0xff]
          %v386 = vld [vmem:[%s4 + $0xa0] sm:$0xff]
          %v387 = vld [vmem:[%s4 + $0xa8] sm:$0xff]
          %v388 = vld [vmem:[%s4 + $0xb0] sm:$0xff]
          %v389 = vld [vmem:[%s4 + $0xb8] sm:$0xff]
          %v390 = vld [vmem:[%s4 + $0xc0] sm:$0xff]
          %v391 = vld [vmem:[%s4 + $0xc8] sm:$0xff]
          %v392 = vld [vmem:[%s4 + $0xd0] sm:$0xff]
          %v393 = vld [vmem:[%s4 + $0xd8] sm:$0xff]
          %v394 = vld [vmem:[%s4 + $0xe0] sm:$0xff]
          %v395 = vld [vmem:[%s4 + $0xe8] sm:$0xff]
          %v396 = vld [vmem:[%s4 + $0xf0] sm:$0xff]
          %v397 = vld [vmem:[%s4 + $0xf8] sm:$0xff]
          %v430 = vunpack.c.l.b16 %v366
          %v431 = vunpack.c.h.b16 %v366
          %v432 = vunpack.c.l.b16 %v367
          %v433 = vunpack.c.h.b16 %v367
          %v434 = vunpack.c.l.b16 %v368
          %v435 = vunpack.c.h.b16 %v368
          %v436 = vunpack.c.l.b16 %v369
          %v437 = vunpack.c.h.b16 %v369
          %v438 = vunpack.c.l.b16 %v370
          %v439 = vunpack.c.h.b16 %v370
          %v440 = vunpack.c.l.b16 %v371
          %v441 = vunpack.c.h.b16 %v371
          %v442 = vunpack.c.l.b16 %v372
          %v443 = vunpack.c.h.b16 %v372
          %v444 = vunpack.c.l.b16 %v373
          %v445 = vunpack.c.h.b16 %v373
          %v446 = vunpack.c.l.b16 %v374
          %v447 = vunpack.c.h.b16 %v374
          %v448 = vunpack.c.l.b16 %v375
          %v449 = vunpack.c.h.b16 %v375
          %v450 = vunpack.c.l.b16 %v376
          %v451 = vunpack.c.h.b16 %v376
          %v452 = vunpack.c.l.b16 %v377
          %v453 = vunpack.c.h.b16 %v377
          %v454 = vunpack.c.l.b16 %v378
          %v455 = vunpack.c.h.b16 %v378
          %v456 = vunpack.c.l.b16 %v379
          %v457 = vunpack.c.h.b16 %v379
          %v458 = vunpack.c.l.b16 %v380
          %v459 = vunpack.c.h.b16 %v380
          %v460 = vunpack.c.l.b16 %v381
          %v461 = vunpack.c.h.b16 %v381
          %v462 = vunpack.c.l.b16 %v382
          %v463 = vunpack.c.h.b16 %v382
          %v464 = vunpack.c.l.b16 %v383
          %v465 = vunpack.c.h.b16 %v383
          %v466 = vunpack.c.l.b16 %v384
          %v467 = vunpack.c.h.b16 %v384
          %v468 = vunpack.c.l.b16 %v385
          %v469 = vunpack.c.h.b16 %v385
          %v470 = vunpack.c.l.b16 %v386
          %v471 = vunpack.c.h.b16 %v386
          %v472 = vunpack.c.l.b16 %v387
          %v473 = vunpack.c.h.b16 %v387
          %v474 = vunpack.c.l.b16 %v388
          %v475 = vunpack.c.h.b16 %v388
          %v476 = vunpack.c.l.b16 %v389
          %v477 = vunpack.c.h.b16 %v389
          %v478 = vunpack.c.l.b16 %v390
          %v479 = vunpack.c.h.b16 %v390
          %v480 = vunpack.c.l.b16 %v391
          %v481 = vunpack.c.h.b16 %v391
          %v482 = vunpack.c.l.b16 %v392
          %v483 = vunpack.c.h.b16 %v392
          %v484 = vunpack.c.l.b16 %v393
          %v485 = vunpack.c.h.b16 %v393
          %v486 = vunpack.c.l.b16 %v394
          %v487 = vunpack.c.h.b16 %v394
          %v488 = vunpack.c.l.b16 %v395
          %v489 = vunpack.c.h.b16 %v395
          %v490 = vunpack.c.l.b16 %v396
          %v491 = vunpack.c.h.b16 %v396
          %v492 = vunpack.c.l.b16 %v397
          %v493 = vunpack.c.h.b16 %v397
          %v494 = vpack.c.b16 %v434, %v430
          %v495 = vpack.c.b16 %v435, %v431
          %v496 = vpack.c.b16 %v436, %v432
          %v497 = vpack.c.b16 %v437, %v433
          %v498 = vpack.c.b16 %v442, %v438
          %v499 = vpack.c.b16 %v443, %v439
          %v500 = vpack.c.b16 %v444, %v440
          %v501 = vpack.c.b16 %v445, %v441
          %v502 = vpack.c.b16 %v450, %v446
          %v503 = vpack.c.b16 %v451, %v447
          %v504 = vpack.c.b16 %v452, %v448
          %v505 = vpack.c.b16 %v453, %v449
          %v506 = vpack.c.b16 %v458, %v454
          %v507 = vpack.c.b16 %v459, %v455
          %v508 = vpack.c.b16 %v460, %v456
          %v509 = vpack.c.b16 %v461, %v457
          %v510 = vpack.c.b16 %v466, %v462
          %v511 = vpack.c.b16 %v467, %v463
          %v512 = vpack.c.b16 %v468, %v464
          %v513 = vpack.c.b16 %v469, %v465
          %v514 = vpack.c.b16 %v474, %v470
          %v515 = vpack.c.b16 %v475, %v471
          %v516 = vpack.c.b16 %v476, %v472
          %v517 = vpack.c.b16 %v477, %v473
          %v518 = vpack.c.b16 %v482, %v478
          %v519 = vpack.c.b16 %v483, %v479
          %v520 = vpack.c.b16 %v484, %v480
          %v521 = vpack.c.b16 %v485, %v481
          %v522 = vpack.c.b16 %v490, %v486
          %v523 = vpack.c.b16 %v491, %v487
          %v524 = vpack.c.b16 %v492, %v488
          %v525 = vpack.c.b16 %v493, %v489
          %558 = vmatprep.subr.bf16.mxu0 %v523
          %559 = vmatpush1.bf16.msra.mxu0 %v522
          %560 = vmatprep.subr.bf16.mxu0 %v519
          %561 = vmatpush1.bf16.msra.mxu0 %v518
          %562 = vmatprep.subr.bf16.mxu0 %v515
          %563 = vmatpush1.bf16.msra.mxu0 %v514
          %564 = vmatprep.subr.bf16.mxu0 %v511
          %565 = vmatpush1.bf16.msra.mxu0 %v510
          %566 = vmatprep.subr.bf16.mxu0 %v507
          %567 = vmatpush1.bf16.msra.mxu0 %v506
          %568 = vmatprep.subr.bf16.mxu0 %v503
          %569 = vmatpush1.bf16.msra.mxu0 %v502
          %570 = vmatprep.subr.bf16.mxu0 %v499
          %571 = vmatpush1.bf16.msra.mxu0 %v498
          %572 = vmatprep.subr.bf16.mxu0 %v495
          %573 = vmatpush1.bf16.msra.mxu0 %v494
          %574 = vmatprep.subr.bf16.mxu0 0
          %575 = vmatpush2.bf16.msra.mxu0 0
          %576 = vmatprep.subr.bf16.mxu0 0
          %577 = vmatpush2.bf16.msra.mxu0 0
          %578 = vmatprep.subr.bf16.mxu0 0
          %579 = vmatpush2.bf16.msra.mxu0 0
          %580 = vmatprep.subr.bf16.mxu0 0
          %581 = vmatpush2.bf16.msra.mxu0 0
          %582 = vmatprep.subr.bf16.mxu0 0
          %583 = vmatpush2.bf16.msra.mxu0 0
          %584 = vmatprep.subr.bf16.mxu0 0
          %585 = vmatpush2.bf16.msra.mxu0 0
          %586 = vmatprep.subr.bf16.mxu0 0
          %587 = vmatpush2.bf16.msra.mxu0 0
          %588 = vmatprep.subr.bf16.mxu0 0
          %589 = vmatpush2.bf16.msra.mxu0 0
          %590 = vmatprep.mubr.bf16.mxu0 0
          %591 = vmatmul.mubr.bf16.gmra.mxu0 %v365
          %v592 = vpop.f32.mrf.mxu0
          %v593 = vadd.f32 0.0, %v592
          %v594 = vpop.f32.mrf.mxu0
          %v595 = vadd.f32 0.0, %v594
          %v596 = vpop.f32.mrf.mxu0
          %v597 = vpop.f32.mrf.mxu0
          %598 = vdwg.mxu0
          %599 = vmatprep.subr.bf16.mxu0 %v525
          %600 = vmatpush1.bf16.msra.mxu0 %v524
          %601 = vmatprep.subr.bf16.mxu0 %v521
          %602 = vmatpush1.bf16.msra.mxu0 %v520
          %603 = vmatprep.subr.bf16.mxu0 %v517
          %604 = vmatpush1.bf16.msra.mxu0 %v516
          %605 = vmatprep.subr.bf16.mxu0 %v513
          %606 = vmatpush1.bf16.msra.mxu0 %v512
          %607 = vmatprep.subr.bf16.mxu0 %v509
          %608 = vmatpush1.bf16.msra.mxu0 %v508
          %609 = vmatprep.subr.bf16.mxu0 %v505
          %610 = vmatpush1.bf16.msra.mxu0 %v504
          %611 = vmatprep.subr.bf16.mxu0 %v501
          %612 = vmatpush1.bf16.msra.mxu0 %v500
          %613 = vmatprep.subr.bf16.mxu0 %v497
          %614 = vmatpush1.bf16.msra.mxu0 %v496
          %615 = vmatprep.subr.bf16.mxu0 0
          %616 = vmatpush2.bf16.msra.mxu0 0
          %617 = vmatprep.subr.bf16.mxu0 0
          %618 = vmatpush2.bf16.msra.mxu0 0
          %619 = vmatprep.subr.bf16.mxu0 0
          %620 = vmatpush2.bf16.msra.mxu0 0
          %621 = vmatprep.subr.bf16.mxu0 0
          %622 = vmatpush2.bf16.msra.mxu0 0
          %623 = vmatprep.subr.bf16.mxu0 0
          %624 = vmatpush2.bf16.msra.mxu0 0
          %625 = vmatprep.subr.bf16.mxu0 0
          %626 = vmatpush2.bf16.msra.mxu0 0
          %627 = vmatprep.subr.bf16.mxu0 0
          %628 = vmatpush2.bf16.msra.mxu0 0
          %629 = vmatprep.subr.bf16.mxu0 0
          %630 = vmatpush2.bf16.msra.mxu0 0
          %631 = vmatprep.mubr.bf16.mxu0 0
          %632 = vmatmul.mubr.bf16.gmra.mxu0 %v365
          %v633 = vpop.f32.mrf.mxu0
          %v634 = vadd.f32 0.0, %v633
          %v635 = vpop.f32.mrf.mxu0
          %v636 = vadd.f32 0.0, %v635
          %v637 = vpop.f32.mrf.mxu0
          %v638 = vpop.f32.mrf.mxu0
          %639 = vdwg.mxu0
          %v640 = vadd.f32 %v361, %v593
          %v641 = vadd.f32 %v362, %v595
          %v642 = vadd.f32 %v363, %v634
          %v643 = vadd.f32 %v364, %v636
          %v644 = vxor.u32 %v640, 2147483648
          %v645 = vxor.u32 %v641, 2147483648
          %v646 = vxor.u32 %v642, 2147483648
          %v647 = vmul.f32 %v644, 1.442695
          %v648 = vpow.pop %v647
          %v649 = vmul.f32 %v645, 1.442695
          %v650 = vpow.pop %v649
          %v651 = vmul.f32 %v646, 1.442695
          %v652 = vpow.pop %v651
          %v653 = vadd.f32 %v648, 1.0
          %v654 = vadd.f32 %v650, 1.0
          %v655 = vadd.f32 %v652, 1.0
          %v656 = vrcp.pop %v653
          %v657 = vmul.f32 1.0, %v656
          %v658 = vrcp.pop %v654
          %v659 = vmul.f32 1.0, %v658
          %v660 = vrcp.pop %v655
          %v661 = vmul.f32 1.0, %v660
          %v662 = vtanh.pop %v643
          %v663 = vmul.f32 %v659, %v334
          %v664 = vmul.f32 %v657, %v662
          %v665 = vadd.f32 %v663, %v664
          %v666 = vtanh.pop %v665
          %v667 = vmul.f32 %v661, %v666
          %668 = vst [vmem:[#allocation2] sm:$0xff] %v667
          %669 = vst [vmem:[#allocation3] sm:$0xff] %v665
          %v670 = vpack.c.bf16 %v667, %v667
          %v671 = vld [vmem:[%s7] sm:$0xf]
          %v672 = vld [vmem:[%s7 + $0x4] sm:$0xf]
          %v673 = vld [vmem:[%s7 + $0x8] sm:$0xf]
          %v674 = vld [vmem:[%s7 + $0xc] sm:$0xf]
          %v675 = vld [vmem:[%s7 + $0x10] sm:$0xf]
          %v676 = vld [vmem:[%s7 + $0x14] sm:$0xf]
          %v677 = vld [vmem:[%s7 + $0x18] sm:$0xf]
          %v678 = vld [vmem:[%s7 + $0x1c] sm:$0xf]
          %v679 = vld [vmem:[%s7 + $0x20] sm:$0xf]
          %v680 = vld [vmem:[%s7 + $0x24] sm:$0xf]
          %v681 = vld [vmem:[%s7 + $0x28] sm:$0xf]
          %v682 = vld [vmem:[%s7 + $0x2c] sm:$0xf]
          %v683 = vld [vmem:[%s7 + $0x30] sm:$0xf]
          %v684 = vld [vmem:[%s7 + $0x34] sm:$0xf]
          %v685 = vld [vmem:[%s7 + $0x38] sm:$0xf]
          %v686 = vld [vmem:[%s7 + $0x3c] sm:$0xf]
          %v687 = vld [vmem:[%s8] sm:$0x1]
          %v689 = vlaneseq
          %v690 = vshrl.u32 %v689, 7
          %v691 = vsub.s32 0, %v690
          %v692 = vrot.slane %v687, %v691
          %v710 = vunpack.c.l.b16 %v671
          %v711 = vunpack.c.l.b16 %v672
          %v712 = vunpack.c.l.b16 %v673
          %v713 = vunpack.c.l.b16 %v674
          %v714 = vunpack.c.l.b16 %v675
          %v715 = vunpack.c.l.b16 %v676
          %v716 = vunpack.c.l.b16 %v677
          %v717 = vunpack.c.l.b16 %v678
          %v718 = vunpack.c.l.b16 %v679
          %v719 = vunpack.c.l.b16 %v680
          %v720 = vunpack.c.l.b16 %v681
          %v721 = vunpack.c.l.b16 %v682
          %v722 = vunpack.c.l.b16 %v683
          %v723 = vunpack.c.l.b16 %v684
          %v724 = vunpack.c.l.b16 %v685
          %v725 = vunpack.c.l.b16 %v686
          %v726 = vpack.c.b16 %v711, %v710
          %v727 = vpack.c.b16 %v713, %v712
          %v728 = vpack.c.b16 %v715, %v714
          %v729 = vpack.c.b16 %v717, %v716
          %v730 = vpack.c.b16 %v719, %v718
          %v731 = vpack.c.b16 %v721, %v720
          %v732 = vpack.c.b16 %v723, %v722
          %v733 = vpack.c.b16 %v725, %v724
          %742 = vmatprep.subr.bf16.mxu0 0
          %743 = vmatpush1.bf16.msra.mxu0 %v733
          %744 = vmatprep.subr.bf16.mxu0 0
          %745 = vmatpush1.bf16.msra.mxu0 %v732
          %746 = vmatprep.subr.bf16.mxu0 0
          %747 = vmatpush1.bf16.msra.mxu0 %v731
          %748 = vmatprep.subr.bf16.mxu0 0
          %749 = vmatpush1.bf16.msra.mxu0 %v730
          %750 = vmatprep.subr.bf16.mxu0 0
          %751 = vmatpush1.bf16.msra.mxu0 %v729
          %752 = vmatprep.subr.bf16.mxu0 0
          %753 = vmatpush1.bf16.msra.mxu0 %v728
          %754 = vmatprep.subr.bf16.mxu0 0
          %755 = vmatpush1.bf16.msra.mxu0 %v727
          %756 = vmatprep.subr.bf16.mxu0 0
          %757 = vmatpush1.bf16.msra.mxu0 %v726
          %758 = vmatprep.subr.bf16.mxu0 0
          %759 = vmatpush2.bf16.msra.mxu0 0
          %760 = vmatprep.subr.bf16.mxu0 0
          %761 = vmatpush2.bf16.msra.mxu0 0
          %762 = vmatprep.subr.bf16.mxu0 0
          %763 = vmatpush2.bf16.msra.mxu0 0
          %764 = vmatprep.subr.bf16.mxu0 0
          %765 = vmatpush2.bf16.msra.mxu0 0
          %766 = vmatprep.subr.bf16.mxu0 0
          %767 = vmatpush2.bf16.msra.mxu0 0
          %768 = vmatprep.subr.bf16.mxu0 0
          %769 = vmatpush2.bf16.msra.mxu0 0
          %770 = vmatprep.subr.bf16.mxu0 0
          %771 = vmatpush2.bf16.msra.mxu0 0
          %772 = vmatprep.subr.bf16.mxu0 0
          %773 = vmatpush2.bf16.msra.mxu0 0
          %774 = vmatprep.mubr.bf16.mxu0 0
          %775 = vmatmul.mubr.bf16.gmra.mxu0 %v670
          %v776 = vpop.f32.mrf.mxu0
          %v777 = vadd.f32 %v692, %v776
          %v778 = vpop.f32.mrf.mxu0
          %v779 = vpop.f32.mrf.mxu0
          %v780 = vpop.f32.mrf.mxu0
          %781 = vdwg.mxu0
          %782 = vst [vmem:[%s305] sm:$0xff] %v777
          %s783 = sld [smem:[#allocation6 + %s29]]
          %p784 = scmp.ne.s32.totalorder %s783, 0
          // Predicated region
          $region61: #{seq2seq_forward.3} parent=59 // pred_check
            %p785 = pneg %p784
          $region62: #{seq2seq_forward.3} parent=59 // pred_check_branch
            %787 = sbr.rel (%p785) target = $region64
          $region63: #{seq2seq_forward.3} parent=59 // pred_region
            %v788 = vld [vmem:[%s310] sm:$0xff]
            %v789 = vld [vmem:[%s310 + $0x8] sm:$0xff]
            %v790 = vld [vmem:[%s310 + $0x10] sm:$0xff]
            %v791 = vld [vmem:[%s310 + $0x18] sm:$0xff]
            %792 = vst [vmem:[#allocation4] sm:$0xff] %v788
            %793 = vst [vmem:[#allocation4 + $0x8] sm:$0xff] %v789
            %794 = vst [vmem:[#allocation4 + $0x10] sm:$0xff] %v790
            %795 = vst [vmem:[#allocation4 + $0x18] sm:$0xff] %v791
          $region64: #{seq2seq_forward.3} parent=59 // pred_fallthru
            _
          %p796 = scmp.eq.s32.totalorder %s783, 0
          // Predicated region
          $region65: #{seq2seq_forward.3} parent=59 // pred_check
            %p797 = pneg %p796
          $region66: #{seq2seq_forward.3} parent=59 // pred_check_branch
            %799 = sbr.rel (%p797) target = $region68
          $region67: #{seq2seq_forward.3} parent=59 // pred_region
            %v800 = vlaneseq
            %v801 = vand.u32 %v800, 127
            %802 = vmax.xlane.f32.xlu0 %v777
            %v803 = vpop.xlane.xlu0 %802
            %vm804 = vcmp.eq.f32.partialorder %v777, %v803
            %v805 = vsel %vm804, %v801, 128
            %v806 = vand.u32 %v805, 65535
            %v807 = vshra.s32 %v805, 16
            %v808 = vcvt.s32.f32 %v806
            %v809 = vcvt.s32.f32 %v807
            %810 = vmin.xlane.f32.xlu0 %v809
            %v811 = vpop.xlane.xlu0 %810
            %vm812 = vcmp.eq.f32.partialorder %v809, %v811
            %v813 = vsel %vm812, %v808, inf
            %814 = vmin.xlane.f32.xlu0 %v813
            %v815 = vpop.xlane.xlu0 %814
            %v816 = vcvt.f32.s32 %v815
            %v817 = vcvt.f32.s32 %v811
            %v818 = vshll.u32 %v817, 16
            %v819 = vadd.s32 %v818, %v816
            %vm820 = vcmp.eq.s32.totalorder %v801, %v819
            %v821 = vsel %vm820, 1, 0
            %v822 = vcvt.s32.f32 %v821
            %v823 = vpack.c.bf16 %v822, %v822
            %v824 = vld [vmem:[%s6] sm:$0xff]
            %v825 = vld [vmem:[%s6 + $0x8] sm:$0xff]
            %v826 = vld [vmem:[%s6 + $0x10] sm:$0xff]
            %v827 = vld [vmem:[%s6 + $0x18] sm:$0xff]
            %v828 = vld [vmem:[%s6 + $0x20] sm:$0xff]
            %v829 = vld [vmem:[%s6 + $0x28] sm:$0xff]
            %v830 = vld [vmem:[%s6 + $0x30] sm:$0xff]
            %v831 = vld [vmem:[%s6 + $0x38] sm:$0xff]
            %v832 = vld [vmem:[%s6 + $0x40] sm:$0xff]
            %v833 = vld [vmem:[%s6 + $0x48] sm:$0xff]
            %v834 = vld [vmem:[%s6 + $0x50] sm:$0xff]
            %v835 = vld [vmem:[%s6 + $0x58] sm:$0xff]
            %v836 = vld [vmem:[%s6 + $0x60] sm:$0xff]
            %v837 = vld [vmem:[%s6 + $0x68] sm:$0xff]
            %v838 = vld [vmem:[%s6 + $0x70] sm:$0xff]
            %v839 = vld [vmem:[%s6 + $0x78] sm:$0xff]
            %v840 = vld [vmem:[%s6 + $0x80] sm:$0xff]
            %v841 = vld [vmem:[%s6 + $0x88] sm:$0xff]
            %v842 = vld [vmem:[%s6 + $0x90] sm:$0xff]
            %v843 = vld [vmem:[%s6 + $0x98] sm:$0xff]
            %v844 = vld [vmem:[%s6 + $0xa0] sm:$0xff]
            %v845 = vld [vmem:[%s6 + $0xa8] sm:$0xff]
            %v846 = vld [vmem:[%s6 + $0xb0] sm:$0xff]
            %v847 = vld [vmem:[%s6 + $0xb8] sm:$0xff]
            %v848 = vld [vmem:[%s6 + $0xc0] sm:$0xff]
            %v849 = vld [vmem:[%s6 + $0xc8] sm:$0xff]
            %v850 = vld [vmem:[%s6 + $0xd0] sm:$0xff]
            %v851 = vld [vmem:[%s6 + $0xd8] sm:$0xff]
            %v852 = vld [vmem:[%s6 + $0xe0] sm:$0xff]
            %v853 = vld [vmem:[%s6 + $0xe8] sm:$0xff]
            %v854 = vld [vmem:[%s6 + $0xf0] sm:$0xff]
            %v855 = vld [vmem:[%s6 + $0xf8] sm:$0xff]
            %v888 = vunpack.c.l.b16 %v824
            %v889 = vunpack.c.h.b16 %v824
            %v890 = vunpack.c.l.b16 %v825
            %v891 = vunpack.c.h.b16 %v825
            %v892 = vunpack.c.l.b16 %v826
            %v893 = vunpack.c.h.b16 %v826
            %v894 = vunpack.c.l.b16 %v827
            %v895 = vunpack.c.h.b16 %v827
            %v896 = vunpack.c.l.b16 %v828
            %v897 = vunpack.c.h.b16 %v828
            %v898 = vunpack.c.l.b16 %v829
            %v899 = vunpack.c.h.b16 %v829
            %v900 = vunpack.c.l.b16 %v830
            %v901 = vunpack.c.h.b16 %v830
            %v902 = vunpack.c.l.b16 %v831
            %v903 = vunpack.c.h.b16 %v831
            %v904 = vunpack.c.l.b16 %v832
            %v905 = vunpack.c.h.b16 %v832
            %v906 = vunpack.c.l.b16 %v833
            %v907 = vunpack.c.h.b16 %v833
            %v908 = vunpack.c.l.b16 %v834
            %v909 = vunpack.c.h.b16 %v834
            %v910 = vunpack.c.l.b16 %v835
            %v911 = vunpack.c.h.b16 %v835
            %v912 = vunpack.c.l.b16 %v836
            %v913 = vunpack.c.h.b16 %v836
            %v914 = vunpack.c.l.b16 %v837
            %v915 = vunpack.c.h.b16 %v837
            %v916 = vunpack.c.l.b16 %v838
            %v917 = vunpack.c.h.b16 %v838
            %v918 = vunpack.c.l.b16 %v839
            %v919 = vunpack.c.h.b16 %v839
            %v920 = vunpack.c.l.b16 %v840
            %v921 = vunpack.c.h.b16 %v840
            %v922 = vunpack.c.l.b16 %v841
            %v923 = vunpack.c.h.b16 %v841
            %v924 = vunpack.c.l.b16 %v842
            %v925 = vunpack.c.h.b16 %v842
            %v926 = vunpack.c.l.b16 %v843
            %v927 = vunpack.c.h.b16 %v843
            %v928 = vunpack.c.l.b16 %v844
            %v929 = vunpack.c.h.b16 %v844
            %v930 = vunpack.c.l.b16 %v845
            %v931 = vunpack.c.h.b16 %v845
            %v932 = vunpack.c.l.b16 %v846
            %v933 = vunpack.c.h.b16 %v846
            %v934 = vunpack.c.l.b16 %v847
            %v935 = vunpack.c.h.b16 %v847
            %v936 = vunpack.c.l.b16 %v848
            %v937 = vunpack.c.h.b16 %v848
            %v938 = vunpack.c.l.b16 %v849
            %v939 = vunpack.c.h.b16 %v849
            %v940 = vunpack.c.l.b16 %v850
            %v941 = vunpack.c.h.b16 %v850
            %v942 = vunpack.c.l.b16 %v851
            %v943 = vunpack.c.h.b16 %v851
            %v944 = vunpack.c.l.b16 %v852
            %v945 = vunpack.c.h.b16 %v852
            %v946 = vunpack.c.l.b16 %v853
            %v947 = vunpack.c.h.b16 %v853
            %v948 = vunpack.c.l.b16 %v854
            %v949 = vunpack.c.h.b16 %v854
            %v950 = vunpack.c.l.b16 %v855
            %v951 = vunpack.c.h.b16 %v855
            %v952 = vpack.c.b16 %v892, %v888
            %v953 = vpack.c.b16 %v893, %v889
            %v954 = vpack.c.b16 %v894, %v890
            %v955 = vpack.c.b16 %v895, %v891
            %v956 = vpack.c.b16 %v900, %v896
            %v957 = vpack.c.b16 %v901, %v897
            %v958 = vpack.c.b16 %v902, %v898
            %v959 = vpack.c.b16 %v903, %v899
            %v960 = vpack.c.b16 %v908, %v904
            %v961 = vpack.c.b16 %v909, %v905
            %v962 = vpack.c.b16 %v910, %v906
            %v963 = vpack.c.b16 %v911, %v907
            %v964 = vpack.c.b16 %v916, %v912
            %v965 = vpack.c.b16 %v917, %v913
            %v966 = vpack.c.b16 %v918, %v914
            %v967 = vpack.c.b16 %v919, %v915
            %v968 = vpack.c.b16 %v924, %v920
            %v969 = vpack.c.b16 %v925, %v921
            %v970 = vpack.c.b16 %v926, %v922
            %v971 = vpack.c.b16 %v927, %v923
            %v972 = vpack.c.b16 %v932, %v928
            %v973 = vpack.c.b16 %v933, %v929
            %v974 = vpack.c.b16 %v934, %v930
            %v975 = vpack.c.b16 %v935, %v931
            %v976 = vpack.c.b16 %v940, %v936
            %v977 = vpack.c.b16 %v941, %v937
            %v978 = vpack.c.b16 %v942, %v938
            %v979 = vpack.c.b16 %v943, %v939
            %v980 = vpack.c.b16 %v948, %v944
            %v981 = vpack.c.b16 %v949, %v945
            %v982 = vpack.c.b16 %v950, %v946
            %v983 = vpack.c.b16 %v951, %v947
            %1016 = vmatprep.subr.bf16.mxu0 %v981
            %1017 = vmatpush1.bf16.msra.mxu0 %v980
            %1018 = vmatprep.subr.bf16.mxu0 %v977
            %1019 = vmatpush1.bf16.msra.mxu0 %v976
            %1020 = vmatprep.subr.bf16.mxu0 %v973
            %1021 = vmatpush1.bf16.msra.mxu0 %v972
            %1022 = vmatprep.subr.bf16.mxu0 %v969
            %1023 = vmatpush1.bf16.msra.mxu0 %v968
            %1024 = vmatprep.subr.bf16.mxu0 %v965
            %1025 = vmatpush1.bf16.msra.mxu0 %v964
            %1026 = vmatprep.subr.bf16.mxu0 %v961
            %1027 = vmatpush1.bf16.msra.mxu0 %v960
            %1028 = vmatprep.subr.bf16.mxu0 %v957
            %1029 = vmatpush1.bf16.msra.mxu0 %v956
            %1030 = vmatprep.subr.bf16.mxu0 %v953
            %1031 = vmatpush1.bf16.msra.mxu0 %v952
            %1032 = vmatprep.subr.bf16.mxu0 0
            %1033 = vmatpush2.bf16.msra.mxu0 0
            %1034 = vmatprep.subr.bf16.mxu0 0
            %1035 = vmatpush2.bf16.msra.mxu0 0
            %1036 = vmatprep.subr.bf16.mxu0 0
            %1037 = vmatpush2.bf16.msra.mxu0 0
            %1038 = vmatprep.subr.bf16.mxu0 0
            %1039 = vmatpush2.bf16.msra.mxu0 0
            %1040 = vmatprep.subr.bf16.mxu0 0
            %1041 = vmatpush2.bf16.msra.mxu0 0
            %1042 = vmatprep.subr.bf16.mxu0 0
            %1043 = vmatpush2.bf16.msra.mxu0 0
            %1044 = vmatprep.subr.bf16.mxu0 0
            %1045 = vmatpush2.bf16.msra.mxu0 0
            %1046 = vmatprep.subr.bf16.mxu0 0
            %1047 = vmatpush2.bf16.msra.mxu0 0
            %1048 = vmatprep.mubr.bf16.mxu0 0
            %1049 = vmatmul.mubr.bf16.gmra.mxu0 %v823
            %v1050 = vpop.f32.mrf.mxu0
            %v1051 = vadd.f32 0.0, %v1050
            %v1052 = vpop.f32.mrf.mxu0
            %v1053 = vadd.f32 0.0, %v1052
            %v1054 = vpop.f32.mrf.mxu0
            %v1055 = vpop.f32.mrf.mxu0
            %1056 = vdwg.mxu0
            %1057 = vmatprep.subr.bf16.mxu0 %v983
            %1058 = vmatpush1.bf16.msra.mxu0 %v982
            %1059 = vmatprep.subr.bf16.mxu0 %v979
            %1060 = vmatpush1.bf16.msra.mxu0 %v978
            %1061 = vmatprep.subr.bf16.mxu0 %v975
            %1062 = vmatpush1.bf16.msra.mxu0 %v974
            %1063 = vmatprep.subr.bf16.mxu0 %v971
            %1064 = vmatpush1.bf16.msra.mxu0 %v970
            %1065 = vmatprep.subr.bf16.mxu0 %v967
            %1066 = vmatpush1.bf16.msra.mxu0 %v966
            %1067 = vmatprep.subr.bf16.mxu0 %v963
            %1068 = vmatpush1.bf16.msra.mxu0 %v962
            %1069 = vmatprep.subr.bf16.mxu0 %v959
            %1070 = vmatpush1.bf16.msra.mxu0 %v958
            %1071 = vmatprep.subr.bf16.mxu0 %v955
            %1072 = vmatpush1.bf16.msra.mxu0 %v954
            %1073 = vmatprep.subr.bf16.mxu0 0
            %1074 = vmatpush2.bf16.msra.mxu0 0
            %1075 = vmatprep.subr.bf16.mxu0 0
            %1076 = vmatpush2.bf16.msra.mxu0 0
            %1077 = vmatprep.subr.bf16.mxu0 0
            %1078 = vmatpush2.bf16.msra.mxu0 0
            %1079 = vmatprep.subr.bf16.mxu0 0
            %1080 = vmatpush2.bf16.msra.mxu0 0
            %1081 = vmatprep.subr.bf16.mxu0 0
            %1082 = vmatpush2.bf16.msra.mxu0 0
            %1083 = vmatprep.subr.bf16.mxu0 0
            %1084 = vmatpush2.bf16.msra.mxu0 0
            %1085 = vmatprep.subr.bf16.mxu0 0
            %1086 = vmatpush2.bf16.msra.mxu0 0
            %1087 = vmatprep.subr.bf16.mxu0 0
            %1088 = vmatpush2.bf16.msra.mxu0 0
            %1089 = vmatprep.mubr.bf16.mxu0 0
            %1090 = vmatmul.mubr.bf16.gmra.mxu0 %v823
            %v1091 = vpop.f32.mrf.mxu0
            %v1092 = vadd.f32 0.0, %v1091
            %v1093 = vpop.f32.mrf.mxu0
            %v1094 = vadd.f32 0.0, %v1093
            %v1095 = vpop.f32.mrf.mxu0
            %v1096 = vpop.f32.mrf.mxu0
            %1097 = vdwg.mxu0
            %1098 = vst [vmem:[#allocation4] sm:$0xff] %v1051
            %1099 = vst [vmem:[#allocation4 + $0x8] sm:$0xff] %v1053
            %1100 = vst [vmem:[#allocation4 + $0x10] sm:$0xff] %v1092
            %1101 = vst [vmem:[#allocation4 + $0x18] sm:$0xff] %v1094
          $region68: #{seq2seq_forward.3} parent=59 // pred_fallthru
            _
        $region60: #{seq2seq_forward.3} parent=51 // pred_fallthru
          _
        %s1102 = sand.u32 %s210, 1
        %s1103 = scalar_lea.sflag [#allocation8], %s1102
        %s1104 = sand.u32 %s210, 1
        %s1105 = smul.addr %s1104, 8
        %s1106 = scalar_lea.vmem [#allocation7], %s1105
        // Predicated region
        $region69: #{seq2seq_forward.3} parent=51 // pred_check
          %p1107 = pneg %p220
        $region70: #{seq2seq_forward.3} parent=51 // pred_check_branch
          %1109 = sbr.rel (%p1107) target = $region72
        $region71: #{seq2seq_forward.3} parent=51 // pred_region
          %s1111 = ssub.s32 128, 128
          %1112 = vsyncadd %s1103, %s1111
          %s1113 = smul.addr %s29, 128
          %s1114 = scalar_lea.hbm %s9, %s1113
          %s1116 = sshll.u32 %s1106, 4
          %s1117 = int_to_ptr.vmem [resolvable:$true] %s1116
          %1119 = dma.vmem_to_hbm [thread:$0]  %s1117, 128, %s1114, %s1103
        $region72: #{seq2seq_forward.3} parent=51 // pred_fallthru
          _
      $region52: #{seq2seq_forward.3} parent=5 // pred_fallthru
        _
      %p1120 = scmp.le.s32.totalorder 2, %s24
      // Predicated region
      $region73: #{seq2seq_forward.3} parent=5 // pred_check
        %p1121 = pneg %p1120
      $region74: #{seq2seq_forward.3} parent=5 // pred_check_branch
        %1123 = sbr.rel (%p1121) target = $region76
      $region75: #{seq2seq_forward.3} parent=5 // pred_region
        %s1124 = ssub.s32 %s24, 2
        // Predicated region
        $region77: #{seq2seq_forward.3} parent=75 // pred_check
          %p1125 = pneg %p226
        $region78: #{seq2seq_forward.3} parent=75 // pred_check_branch
          %1127 = sbr.rel (%p1125) target = $region80
        $region79: #{seq2seq_forward.3} parent=75 // pred_region
          %s1128 = sand.u32 %s211, 1
          %s1129 = scalar_lea.sflag [#allocation8], %s1128
          %s1130 = sand.u32 %s211, 1
          %s1131 = smul.addr %s1130, 8
          %s1132 = scalar_lea.vmem [#allocation7], %s1131
          %1133 = dma.done %s1129, 128
        $region80: #{seq2seq_forward.3} parent=75 // pred_fallthru
          _
      $region76: #{seq2seq_forward.3} parent=5 // pred_fallthru
        _
    $region6: #{seq2seq_forward.3} parent=1 // loop_footer
      %s28 = sadd.s32 1, %s24
    $region7: #{seq2seq_forward.3} parent=1 // loop_footer_branch
      %23 = sbr.rel target = $region3
    $region8: #{seq2seq_forward.3} parent=1 // loop_exit
      _
    %1134 = vsyncpa [#allocation8], 1
    %s1135 = scalar_lea.sflag [#allocation8], 1
    %1136 = vsyncpa %s1135, 1

</llo_original>
